<compile_context>
chip_gen: v7x
topology: tpu7x:2x2x1
jax: 0.10.0
libtpu: 0.0.40
codegen_flags: <defaults>
</compile_context>

<pallas_src>
import jax
import jax.numpy as jnp
from jax.experimental import pallas as pl
from jax.experimental.pallas import tpu as pltpu

# ----------------------------- config -------------------------------------
B = 2                       # nb_samples
C = 2                       # nb_channels
S = 32                      # nb_slices
L = 256                     # samples per slice (hop == slice length)
T_AUDIO = S * L             # nb_timesteps per channel
# jagged sliCQ blocks: (F_i, T_i) per block, F_i * T_i * 2 == L
BLOCKS = ((8, 16), (16, 8))
FT = tuple(f * t for f, t in BLOCKS)     # coeffs per complex component
FT0, FT1 = FT
TOTAL_FT = sum(FT)                       # 256
N_SRC = 4                   # vocals, drums, bass, other
EPS = 1e-10

NF = B * C * S              # total audio frames
TM = S                      # frame-tile rows (one (batch, channel) per tile)
GRID = NF // TM             # = B * C
assert NF % TM == 0


# --------------------------- fused Pallas kernel ---------------------------
def _separator_kernel(frames_ref, w_an_ref, w_x0_ref, w_x1_ref, w_syn_ref,
                      o_ref, ycoef_ref):
    # ---- analysis (NSGT stand-in): one wide MXU matmul --------------------
    # TODO(synk): real NSGT/sliCQ is an FFT-based filterbank; modeled as a
    # framed linear analysis transform.
    frames = frames_ref[...].astype(jnp.bfloat16)               # (TM, L)
    coeffs = jnp.dot(frames, w_an_ref[...],
                     preferred_element_type=jnp.float32)        # (TM, 2*sumFT)

    # ---- ComplexNorm: component-major layout -> two full-width slices -----
    re = coeffs[:, :TOTAL_FT]                                   # [b0_re|b1_re]
    im = coeffs[:, TOTAL_FT:]                                   # [b0_im|b1_im]
    mag = jnp.sqrt(re * re + im * im)                           # (TM, sumFT)
    mag_bf = mag.astype(jnp.bfloat16)

    # ---- X-UMX stand-in: per-block frequency-mixing matmul + ReLU ---------
    # (two dense per-block matmuls instead of one half-zero block-diagonal)
    ymag = (
        jnp.maximum(jnp.dot(mag_bf[:, :FT0], w_x0_ref[...],
                            preferred_element_type=jnp.float32), 0.0),
        jnp.maximum(jnp.dot(mag_bf[:, FT0:], w_x1_ref[...],
                            preferred_element_type=jnp.float32), 0.0),
    )

    # ---- Wiener power-ratio masks applied to the complex mixture ----------
    # TODO(synk): niter=1 EM Wiener (softmask=False) not implemented; using a
    # single-pass power-ratio mask applied to the complex mixture.
    off = 0
    for bi, ft in enumerate(FT):
        yb = ymag[bi]                                           # (TM, 4*ft)
        p = [yb[:, j * ft:(j + 1) * ft] ** 2 for j in range(N_SRC)]
        inv = pl.reciprocal(p[0] + p[1] + p[2] + p[3] + EPS, approx=False)
        re_b = re[:, off:off + ft]
        im_b = im[:, off:off + ft]
        for j in range(N_SRC):
            mask = p[j] * inv
            # direct stores into the (4*TM, 2*sumFT) scratch: no concatenates
            ycoef_ref[j * TM:(j + 1) * TM, off:off + ft] = \
                (mask * re_b).astype(jnp.bfloat16)
            ycoef_ref[j * TM:(j + 1) * TM, TOTAL_FT + off:TOTAL_FT + off + ft] = \
                (mask * im_b).astype(jnp.bfloat16)
        off += ft

    # ---- synthesis (iNSGT stand-in): one (4*TM, 2*sumFT)@(2*sumFT, L) -----
    # The sum over jagged blocks falls out of the K reduction.
    o_ref[...] = jnp.dot(ycoef_ref[...], w_syn_ref[...],
                         preferred_element_type=jnp.float32)    # (4*TM, L)


# ------------------ deterministic synthetic parameters ---------------------
def make_params():
    key = jax.random.PRNGKey(0)
    keys = jax.random.split(key, 3 * len(BLOCKS))
    an_re, an_im, syn_re, syn_im, W_x = [], [], [], [], []
    for i, (Fi, Ti) in enumerate(BLOCKS):
        k1, k2, k3 = keys[3 * i:3 * i + 3]
        ft = Fi * Ti
        # synthetic NSGT analysis / synthesis filterbanks (framed linear
        # maps), split into re/im column/row groups so the global layout is
        # component-major across blocks: [b0_re | b1_re | b0_im | b1_im].
        Wa = jax.random.normal(k1, (L, 2 * ft), jnp.float32) / jnp.sqrt(L)
        an_re.append(Wa[:, :ft])
        an_im.append(Wa[:, ft:])
        Ws = jax.random.normal(k2, (2 * ft, L), jnp.float32) / jnp.sqrt(2 * ft)
        syn_re.append(Ws[:ft])
        syn_im.append(Ws[ft:])
        # synthetic X-UMX: per-block frequency-mixing weights for 4 targets,
        # expanded with kron(I_Ti) so the tiny K=Fi contraction becomes one
        # dense per-block K=ft MXU matmul (source-major output columns).
        Wx = jax.random.normal(k3, (N_SRC, Fi, Fi), jnp.float32) / jnp.sqrt(Fi)
        big = jnp.einsum('sfg,ut->gusft', Wx, jnp.eye(Ti, dtype=jnp.float32))
        W_x.append(big.reshape(ft, N_SRC * ft).astype(jnp.bfloat16))

    W_an = jnp.concatenate(an_re + an_im, axis=1).astype(jnp.bfloat16)   # (L, 2*sumFT)
    W_syn = jnp.concatenate(syn_re + syn_im, axis=0).astype(jnp.bfloat16)  # (2*sumFT, L)
    return W_an, W_x[0], W_x[1], W_syn


# ------------------------- forward pass (wrapper) ---------------------------
def separator_forward(audio, params):
    """audio: (nb_samples, nb_channels, nb_timesteps) ->
       estimates: (nb_samples, 4, nb_channels, nb_timesteps)"""
    W_an, W_x0, W_x1, W_syn = params
    frames = audio.reshape(NF, L)                               # (B*C*S, L)

    est = pl.pallas_call(
        _separator_kernel,
        out_shape=jax.ShapeDtypeStruct((GRID * N_SRC * TM, L), jnp.float32),
        grid=(GRID,),
        in_specs=[
            # frame tiles pipeline across the grid
            pl.BlockSpec((TM, L), lambda i: (i, 0)),
            # weights: constant block index -> DMA'd once, VMEM-resident
            pl.BlockSpec(W_an.shape, lambda i: (0, 0)),
            pl.BlockSpec(W_x0.shape, lambda i: (0, 0)),
            pl.BlockSpec(W_x1.shape, lambda i: (0, 0)),
            pl.BlockSpec(W_syn.shape, lambda i: (0, 0)),
        ],
        out_specs=pl.BlockSpec((N_SRC * TM, L), lambda i: (i, 0)),
        scratch_shapes=[pltpu.VMEM((N_SRC * TM, 2 * TOTAL_FT), jnp.bfloat16)],
        compiler_params=pltpu.CompilerParams(
            # "parallel" shards frame tiles across both v7x TensorCores
            dimension_semantics=("parallel",),
            vmem_limit_bytes=32 * 1024 * 1024,
        ),
    )(frames, W_an, W_x0, W_x1, W_syn)

    # row layout: tile (= b*C + c) major, then target, then slice
    est = est.reshape(B, C, N_SRC, S, L)
    est = jnp.transpose(est, (0, 2, 1, 3, 4))                   # (B, 4, C, S, L)
    est = est.reshape(B, N_SRC, C, S * L)                       # slices -> time
    return est[..., :audio.shape[-1]]


# --------------------------------- main -------------------------------------
if __name__ == "__main__":
    params = make_params()
    audio = jax.random.normal(jax.random.PRNGKey(0), (B, C, T_AUDIO),
                              dtype=jnp.float32)
    fwd = jax.jit(separator_forward)
    out = jax.block_until_ready(fwd(audio, params))
    assert out.shape == (B, N_SRC, C, T_AUDIO), out.shape
    assert bool(jnp.all(jnp.isfinite(out)))
    print("KERNEL_OK")
</pallas_src>

<mosaic_0001>
module attributes {stable_mosaic.version = 11 : i64} {
  func.func @_separator_kernel(%arg0: i32, %arg1: memref<32x256xf32, #tpu.memory_space<vmem>>, %arg2: memref<256x512xbf16, #tpu.memory_space<vmem>>, %arg3: memref<128x512xbf16, #tpu.memory_space<vmem>>, %arg4: memref<128x512xbf16, #tpu.memory_space<vmem>>, %arg5: memref<512x256xbf16, #tpu.memory_space<vmem>>, %arg6: memref<128x256xf32, #tpu.memory_space<vmem>>, %arg7: memref<128x512xbf16, #tpu.memory_space<vmem>>) attributes {dimension_semantics = [#tpu.dimension_semantics<parallel>], iteration_bounds = array<i64: 4>, scalar_prefetch = 0 : i64, scratch_operands = 1 : i64, tpu.core_type = #tpu.core_type<tc>, window_params = [{transform_indices = @transform_0, window_bounds = array<i64: 32, 256>}, {pipeline_mode = #tpu.pipeline_mode<synchronous>, transform_indices = @transform_1, window_bounds = array<i64: 256, 512>}, {pipeline_mode = #tpu.pipeline_mode<synchronous>, transform_indices = @transform_2, window_bounds = array<i64: 128, 512>}, {pipeline_mode = #tpu.pipeline_mode<synchronous>, transform_indices = @transform_3, window_bounds = array<i64: 128, 512>}, {pipeline_mode = #tpu.pipeline_mode<synchronous>, transform_indices = @transform_4, window_bounds = array<i64: 512, 256>}, {transform_indices = @transform_5, window_bounds = array<i64: 128, 256>}]} {
    %c0 = arith.constant 0 : index
    %c0_0 = arith.constant 0 : index
    %0 = vector.load %arg1[%c0, %c0_0] : memref<32x256xf32, #tpu.memory_space<vmem>>, vector<32x256xf32>
    %1 = arith.truncf %0 : vector<32x256xf32> to vector<32x256xbf16>
    %c0_1 = arith.constant 0 : index
    %c0_2 = arith.constant 0 : index
    %2 = vector.load %arg2[%c0_1, %c0_2] : memref<256x512xbf16, #tpu.memory_space<vmem>>, vector<256x512xbf16>
    %cst = arith.constant dense<0.000000e+00> : vector<32x512xf32>
    %3 = tpu.matmul %1, %2, %cst {dimension_numbers = #tpu.dot_dimension_numbers<[1], [0], [0], [1], [0, 0, 1, 1], [], []>} : vector<32x256xbf16>, vector<256x512xbf16>, vector<32x512xf32> -> vector<32x512xf32>
    %4 = vector.extract_strided_slice %3 {offsets = [0, 0], sizes = [32, 256], strides = [1, 1]} : vector<32x512xf32> to vector<32x256xf32>
    %5 = vector.extract_strided_slice %3 {offsets = [0, 256], sizes = [32, 256], strides = [1, 1]} : vector<32x512xf32> to vector<32x256xf32>
    %6 = arith.mulf %4, %4 : vector<32x256xf32>
    %7 = arith.mulf %5, %5 : vector<32x256xf32>
    %8 = arith.addf %6, %7 : vector<32x256xf32>
    %9 = math.sqrt %8 : vector<32x256xf32>
    %10 = arith.truncf %9 : vector<32x256xf32> to vector<32x256xbf16>
    %11 = vector.extract_strided_slice %10 {offsets = [0, 0], sizes = [32, 128], strides = [1, 1]} : vector<32x256xbf16> to vector<32x128xbf16>
    %c0_3 = arith.constant 0 : index
    %c0_4 = arith.constant 0 : index
    %12 = vector.load %arg3[%c0_3, %c0_4] : memref<128x512xbf16, #tpu.memory_space<vmem>>, vector<128x512xbf16>
    %cst_5 = arith.constant dense<0.000000e+00> : vector<32x512xf32>
    %13 = tpu.matmul %11, %12, %cst_5 {dimension_numbers = #tpu.dot_dimension_numbers<[1], [0], [0], [1], [0, 0, 1, 1], [], []>} : vector<32x128xbf16>, vector<128x512xbf16>, vector<32x512xf32> -> vector<32x512xf32>
    %cst_6 = arith.constant 0.000000e+00 : f32
    %14 = vector.broadcast %cst_6 : f32 to vector<32x512xf32>
    %15 = arith.maximumf %13, %14 : vector<32x512xf32>
    %16 = vector.extract_strided_slice %10 {offsets = [0, 128], sizes = [32, 128], strides = [1, 1]} : vector<32x256xbf16> to vector<32x128xbf16>
    %c0_7 = arith.constant 0 : index
    %c0_8 = arith.constant 0 : index
    %17 = vector.load %arg4[%c0_7, %c0_8] : memref<128x512xbf16, #tpu.memory_space<vmem>>, vector<128x512xbf16>
    %cst_9 = arith.constant dense<0.000000e+00> : vector<32x512xf32>
    %18 = tpu.matmul %16, %17, %cst_9 {dimension_numbers = #tpu.dot_dimension_numbers<[1], [0], [0], [1], [0, 0, 1, 1], [], []>} : vector<32x128xbf16>, vector<128x512xbf16>, vector<32x512xf32> -> vector<32x512xf32>
    %cst_10 = arith.constant 0.000000e+00 : f32
    %19 = vector.broadcast %cst_10 : f32 to vector<32x512xf32>
    %20 = arith.maximumf %18, %19 : vector<32x512xf32>
    %21 = vector.extract_strided_slice %15 {offsets = [0, 0], sizes = [32, 128], strides = [1, 1]} : vector<32x512xf32> to vector<32x128xf32>
    %22 = arith.mulf %21, %21 : vector<32x128xf32>
    %23 = vector.extract_strided_slice %15 {offsets = [0, 128], sizes = [32, 128], strides = [1, 1]} : vector<32x512xf32> to vector<32x128xf32>
    %24 = arith.mulf %23, %23 : vector<32x128xf32>
    %25 = vector.extract_strided_slice %15 {offsets = [0, 256], sizes = [32, 128], strides = [1, 1]} : vector<32x512xf32> to vector<32x128xf32>
    %26 = arith.mulf %25, %25 : vector<32x128xf32>
    %27 = vector.extract_strided_slice %15 {offsets = [0, 384], sizes = [32, 128], strides = [1, 1]} : vector<32x512xf32> to vector<32x128xf32>
    %28 = arith.mulf %27, %27 : vector<32x128xf32>
    %29 = arith.addf %22, %24 : vector<32x128xf32>
    %30 = arith.addf %29, %26 : vector<32x128xf32>
    %31 = arith.addf %30, %28 : vector<32x128xf32>
    %cst_11 = arith.constant 1.000000e-10 : f32
    %32 = vector.broadcast %cst_11 : f32 to vector<32x128xf32>
    %33 = arith.addf %31, %32 : vector<32x128xf32>
    %34 = tpu.reciprocal %33 : vector<32x128xf32> -> vector<32x128xf32>
    %35 = vector.extract_strided_slice %4 {offsets = [0, 0], sizes = [32, 128], strides = [1, 1]} : vector<32x256xf32> to vector<32x128xf32>
    %36 = vector.extract_strided_slice %5 {offsets = [0, 0], sizes = [32, 128], strides = [1, 1]} : vector<32x256xf32> to vector<32x128xf32>
    %37 = arith.mulf %22, %34 : vector<32x128xf32>
    %38 = arith.mulf %37, %35 : vector<32x128xf32>
    %39 = arith.truncf %38 : vector<32x128xf32> to vector<32x128xbf16>
    %c0_12 = arith.constant 0 : index
    %c0_13 = arith.constant 0 : index
    %40 = vector.load %arg7[%c0_12, %c0_13] : memref<128x512xbf16, #tpu.memory_space<vmem>>, vector<32x128xbf16>
    tpu.vector_store %arg7[%c0_12, %c0_13], %39 {strides = array<i32>} : memref<128x512xbf16, #tpu.memory_space<vmem>>, vector<32x128xbf16>,
    %41 = arith.mulf %37, %36 : vector<32x128xf32>
    %42 = arith.truncf %41 : vector<32x128xf32> to vector<32x128xbf16>
    %c0_14 = arith.constant 0 : index
    %c256 = arith.constant 256 : index
    %43 = vector.load %arg7[%c0_14, %c256] : memref<128x512xbf16, #tpu.memory_space<vmem>>, vector<32x128xbf16>
    tpu.vector_store %arg7[%c0_14, %c256], %42 {strides = array<i32>} : memref<128x512xbf16, #tpu.memory_space<vmem>>, vector<32x128xbf16>,
    %44 = arith.mulf %24, %34 : vector<32x128xf32>
    %45 = arith.mulf %44, %35 : vector<32x128xf32>
    %46 = arith.truncf %45 : vector<32x128xf32> to vector<32x128xbf16>
    %c32 = arith.constant 32 : index
    %c0_15 = arith.constant 0 : index
    %47 = vector.load %arg7[%c32, %c0_15] : memref<128x512xbf16, #tpu.memory_space<vmem>>, vector<32x128xbf16>
    tpu.vector_store %arg7[%c32, %c0_15], %46 {strides = array<i32>} : memref<128x512xbf16, #tpu.memory_space<vmem>>, vector<32x128xbf16>,
    %48 = arith.mulf %44, %36 : vector<32x128xf32>
    %49 = arith.truncf %48 : vector<32x128xf32> to vector<32x128xbf16>
    %c32_16 = arith.constant 32 : index
    %c256_17 = arith.constant 256 : index
    %50 = vector.load %arg7[%c32_16, %c256_17] : memref<128x512xbf16, #tpu.memory_space<vmem>>, vector<32x128xbf16>
    tpu.vector_store %arg7[%c32_16, %c256_17], %49 {strides = array<i32>} : memref<128x512xbf16, #tpu.memory_space<vmem>>, vector<32x128xbf16>,
    %51 = arith.mulf %26, %34 : vector<32x128xf32>
    %52 = arith.mulf %51, %35 : vector<32x128xf32>
    %53 = arith.truncf %52 : vector<32x128xf32> to vector<32x128xbf16>
    %c64 = arith.constant 64 : index
    %c0_18 = arith.constant 0 : index
    %54 = vector.load %arg7[%c64, %c0_18] : memref<128x512xbf16, #tpu.memory_space<vmem>>, vector<32x128xbf16>
    tpu.vector_store %arg7[%c64, %c0_18], %53 {strides = array<i32>} : memref<128x512xbf16, #tpu.memory_space<vmem>>, vector<32x128xbf16>,
    %55 = arith.mulf %51, %36 : vector<32x128xf32>
    %56 = arith.truncf %55 : vector<32x128xf32> to vector<32x128xbf16>
    %c64_19 = arith.constant 64 : index
    %c256_20 = arith.constant 256 : index
    %57 = vector.load %arg7[%c64_19, %c256_20] : memref<128x512xbf16, #tpu.memory_space<vmem>>, vector<32x128xbf16>
    tpu.vector_store %arg7[%c64_19, %c256_20], %56 {strides = array<i32>} : memref<128x512xbf16, #tpu.memory_space<vmem>>, vector<32x128xbf16>,
    %58 = arith.mulf %28, %34 : vector<32x128xf32>
    %59 = arith.mulf %58, %35 : vector<32x128xf32>
    %60 = arith.truncf %59 : vector<32x128xf32> to vector<32x128xbf16>
    %c96 = arith.constant 96 : index
    %c0_21 = arith.constant 0 : index
    %61 = vector.load %arg7[%c96, %c0_21] : memref<128x512xbf16, #tpu.memory_space<vmem>>, vector<32x128xbf16>
    tpu.vector_store %arg7[%c96, %c0_21], %60 {strides = array<i32>} : memref<128x512xbf16, #tpu.memory_space<vmem>>, vector<32x128xbf16>,
    %62 = arith.mulf %58, %36 : vector<32x128xf32>
    %63 = arith.truncf %62 : vector<32x128xf32> to vector<32x128xbf16>
    %c96_22 = arith.constant 96 : index
    %c256_23 = arith.constant 256 : index
    %64 = vector.load %arg7[%c96_22, %c256_23] : memref<128x512xbf16, #tpu.memory_space<vmem>>, vector<32x128xbf16>
    tpu.vector_store %arg7[%c96_22, %c256_23], %63 {strides = array<i32>} : memref<128x512xbf16, #tpu.memory_space<vmem>>, vector<32x128xbf16>,
    %65 = vector.extract_strided_slice %20 {offsets = [0, 0], sizes = [32, 128], strides = [1, 1]} : vector<32x512xf32> to vector<32x128xf32>
    %66 = arith.mulf %65, %65 : vector<32x128xf32>
    %67 = vector.extract_strided_slice %20 {offsets = [0, 128], sizes = [32, 128], strides = [1, 1]} : vector<32x512xf32> to vector<32x128xf32>
    %68 = arith.mulf %67, %67 : vector<32x128xf32>
    %69 = vector.extract_strided_slice %20 {offsets = [0, 256], sizes = [32, 128], strides = [1, 1]} : vector<32x512xf32> to vector<32x128xf32>
    %70 = arith.mulf %69, %69 : vector<32x128xf32>
    %71 = vector.extract_strided_slice %20 {offsets = [0, 384], sizes = [32, 128], strides = [1, 1]} : vector<32x512xf32> to vector<32x128xf32>
    %72 = arith.mulf %71, %71 : vector<32x128xf32>
    %73 = arith.addf %66, %68 : vector<32x128xf32>
    %74 = arith.addf %73, %70 : vector<32x128xf32>
    %75 = arith.addf %74, %72 : vector<32x128xf32>
    %cst_24 = arith.constant 1.000000e-10 : f32
    %76 = vector.broadcast %cst_24 : f32 to vector<32x128xf32>
    %77 = arith.addf %75, %76 : vector<32x128xf32>
    %78 = tpu.reciprocal %77 : vector<32x128xf32> -> vector<32x128xf32>
    %79 = vector.extract_strided_slice %4 {offsets = [0, 128], sizes = [32, 128], strides = [1, 1]} : vector<32x256xf32> to vector<32x128xf32>
    %80 = vector.extract_strided_slice %5 {offsets = [0, 128], sizes = [32, 128], strides = [1, 1]} : vector<32x256xf32> to vector<32x128xf32>
    %81 = arith.mulf %66, %78 : vector<32x128xf32>
    %82 = arith.mulf %81, %79 : vector<32x128xf32>
    %83 = arith.truncf %82 : vector<32x128xf32> to vector<32x128xbf16>
    %c0_25 = arith.constant 0 : index
    %c128 = arith.constant 128 : index
    %84 = vector.load %arg7[%c0_25, %c128] : memref<128x512xbf16, #tpu.memory_space<vmem>>, vector<32x128xbf16>
    tpu.vector_store %arg7[%c0_25, %c128], %83 {strides = array<i32>} : memref<128x512xbf16, #tpu.memory_space<vmem>>, vector<32x128xbf16>,
    %85 = arith.mulf %81, %80 : vector<32x128xf32>
    %86 = arith.truncf %85 : vector<32x128xf32> to vector<32x128xbf16>
    %c0_26 = arith.constant 0 : index
    %c384 = arith.constant 384 : index
    %87 = vector.load %arg7[%c0_26, %c384] : memref<128x512xbf16, #tpu.memory_space<vmem>>, vector<32x128xbf16>
    tpu.vector_store %arg7[%c0_26, %c384], %86 {strides = array<i32>} : memref<128x512xbf16, #tpu.memory_space<vmem>>, vector<32x128xbf16>,
    %88 = arith.mulf %68, %78 : vector<32x128xf32>
    %89 = arith.mulf %88, %79 : vector<32x128xf32>
    %90 = arith.truncf %89 : vector<32x128xf32> to vector<32x128xbf16>
    %c32_27 = arith.constant 32 : index
    %c128_28 = arith.constant 128 : index
    %91 = vector.load %arg7[%c32_27, %c128_28] : memref<128x512xbf16, #tpu.memory_space<vmem>>, vector<32x128xbf16>
    tpu.vector_store %arg7[%c32_27, %c128_28], %90 {strides = array<i32>} : memref<128x512xbf16, #tpu.memory_space<vmem>>, vector<32x128xbf16>,
    %92 = arith.mulf %88, %80 : vector<32x128xf32>
    %93 = arith.truncf %92 : vector<32x128xf32> to vector<32x128xbf16>
    %c32_29 = arith.constant 32 : index
    %c384_30 = arith.constant 384 : index
    %94 = vector.load %arg7[%c32_29, %c384_30] : memref<128x512xbf16, #tpu.memory_space<vmem>>, vector<32x128xbf16>
    tpu.vector_store %arg7[%c32_29, %c384_30], %93 {strides = array<i32>} : memref<128x512xbf16, #tpu.memory_space<vmem>>, vector<32x128xbf16>,
    %95 = arith.mulf %70, %78 : vector<32x128xf32>
    %96 = arith.mulf %95, %79 : vector<32x128xf32>
    %97 = arith.truncf %96 : vector<32x128xf32> to vector<32x128xbf16>
    %c64_31 = arith.constant 64 : index
    %c128_32 = arith.constant 128 : index
    %98 = vector.load %arg7[%c64_31, %c128_32] : memref<128x512xbf16, #tpu.memory_space<vmem>>, vector<32x128xbf16>
    tpu.vector_store %arg7[%c64_31, %c128_32], %97 {strides = array<i32>} : memref<128x512xbf16, #tpu.memory_space<vmem>>, vector<32x128xbf16>,
    %99 = arith.mulf %95, %80 : vector<32x128xf32>
    %100 = arith.truncf %99 : vector<32x128xf32> to vector<32x128xbf16>
    %c64_33 = arith.constant 64 : index
    %c384_34 = arith.constant 384 : index
    %101 = vector.load %arg7[%c64_33, %c384_34] : memref<128x512xbf16, #tpu.memory_space<vmem>>, vector<32x128xbf16>
    tpu.vector_store %arg7[%c64_33, %c384_34], %100 {strides = array<i32>} : memref<128x512xbf16, #tpu.memory_space<vmem>>, vector<32x128xbf16>,
    %102 = arith.mulf %72, %78 : vector<32x128xf32>
    %103 = arith.mulf %102, %79 : vector<32x128xf32>
    %104 = arith.truncf %103 : vector<32x128xf32> to vector<32x128xbf16>
    %c96_35 = arith.constant 96 : index
    %c128_36 = arith.constant 128 : index
    %105 = vector.load %arg7[%c96_35, %c128_36] : memref<128x512xbf16, #tpu.memory_space<vmem>>, vector<32x128xbf16>
    tpu.vector_store %arg7[%c96_35, %c128_36], %104 {strides = array<i32>} : memref<128x512xbf16, #tpu.memory_space<vmem>>, vector<32x128xbf16>,
    %106 = arith.mulf %102, %80 : vector<32x128xf32>
    %107 = arith.truncf %106 : vector<32x128xf32> to vector<32x128xbf16>
    %c96_37 = arith.constant 96 : index
    %c384_38 = arith.constant 384 : index
    %108 = vector.load %arg7[%c96_37, %c384_38] : memref<128x512xbf16, #tpu.memory_space<vmem>>, vector<32x128xbf16>
    tpu.vector_store %arg7[%c96_37, %c384_38], %107 {strides = array<i32>} : memref<128x512xbf16, #tpu.memory_space<vmem>>, vector<32x128xbf16>,
    %c0_39 = arith.constant 0 : index
    %c0_40 = arith.constant 0 : index
    %109 = vector.load %arg7[%c0_39, %c0_40] : memref<128x512xbf16, #tpu.memory_space<vmem>>, vector<128x512xbf16>
    %c0_41 = arith.constant 0 : index
    %c0_42 = arith.constant 0 : index
    %110 = vector.load %arg5[%c0_41, %c0_42] : memref<512x256xbf16, #tpu.memory_space<vmem>>, vector<512x256xbf16>
    %cst_43 = arith.constant dense<0.000000e+00> : vector<128x256xf32>
    %111 = tpu.matmul %109, %110, %cst_43 {dimension_numbers = #tpu.dot_dimension_numbers<[1], [0], [0], [1], [0, 0, 1, 1], [], []>} : vector<128x512xbf16>, vector<512x256xbf16>, vector<128x256xf32> -> vector<128x256xf32>
    %c0_44 = arith.constant 0 : index
    %c0_45 = arith.constant 0 : index
    %112 = vector.load %arg6[%c0_44, %c0_45] : memref<128x256xf32, #tpu.memory_space<vmem>>, vector<128x256xf32>
    tpu.vector_store %arg6[%c0_44, %c0_45], %111 {strides = array<i32>} : memref<128x256xf32, #tpu.memory_space<vmem>>, vector<128x256xf32>,
    return
  }
  func.func @transform_0(%arg0: i32) -> (i32, i32) {
    %c0_i32 = arith.constant 0 : i32
    %c0_i32_0 = arith.constant 0 : i32
    return %arg0, %c0_i32 : i32, i32
  }
  func.func @transform_1(%arg0: i32) -> (i32, i32) {
    %c0_i32 = arith.constant 0 : i32
    %c0_i32_0 = arith.constant 0 : i32
    %c0_i32_1 = arith.constant 0 : i32
    return %c0_i32, %c0_i32_0 : i32, i32
  }
  func.func @transform_2(%arg0: i32) -> (i32, i32) {
    %c0_i32 = arith.constant 0 : i32
    %c0_i32_0 = arith.constant 0 : i32
    %c0_i32_1 = arith.constant 0 : i32
    return %c0_i32, %c0_i32_0 : i32, i32
  }
  func.func @transform_3(%arg0: i32) -> (i32, i32) {
    %c0_i32 = arith.constant 0 : i32
    %c0_i32_0 = arith.constant 0 : i32
    %c0_i32_1 = arith.constant 0 : i32
    return %c0_i32, %c0_i32_0 : i32, i32
  }
  func.func @transform_4(%arg0: i32) -> (i32, i32) {
    %c0_i32 = arith.constant 0 : i32
    %c0_i32_0 = arith.constant 0 : i32
    %c0_i32_1 = arith.constant 0 : i32
    return %c0_i32, %c0_i32_0 : i32, i32
  }
  func.func @transform_5(%arg0: i32) -> (i32, i32) {
    %c0_i32 = arith.constant 0 : i32
    %c0_i32_0 = arith.constant 0 : i32
    return %arg0, %c0_i32 : i32, i32
  }
}

</mosaic_0001>

<llo_original>
// kernel: separator_forward.1
$region0: #{separator_forward.1}
  #allocation0 [shape = 'u32[]', space=smem, size = 0x4, offset = 0x4, fixed_abs, tag = 'smem constant byte address 0x4 - core index']
  #allocation1 [shape = 'u32[144,128]{1,0:T(1,128)}', space=vmem, size = 0x12000, scoped, tag = 'internal scratch']
  #allocation2 [shape = 'bf16[128,512]{1,0:T(16,128)(2,1)}', space=vmem, size = 0x20000, scoped, tag = 'scratch operand']
  %s0 = inlined_call_operand.vmem [shape: f32[128,256], index: 0, kind: input, shape index: {}]
  %s1 = inlined_call_operand.vmem [shape: bf16[256,512], index: 1, kind: input, shape index: {}]
  %s2 = inlined_call_operand.hbm [shape: bf16[128,512], index: 2, kind: input, shape index: {}]
  %s3 = inlined_call_operand.hbm [shape: bf16[128,512], index: 3, kind: input, shape index: {}]
  %s4 = inlined_call_operand.hbm [shape: bf16[512,256], index: 4, kind: input, shape index: {}]
  %s5 = inlined_call_operand.vmem [shape: f32[512,256], index: 5, kind: output, shape index: {}]
  %s6 = sld [smem:[#allocation0]]
  $region65: #{separator_forward.1} parent=0
    _
  %s8 = ssub.s32 1, %s6
  %s9 = scalar_select 0, %s8, %s6
  $region1: #{separator_forward.1} parent=0
    #allocation3 [shape = 'u8[131072]{0}', space=vmem, size = 0x20000, scoped, tag = 'input window, operand 2, single buffered']
    #allocation4 [shape = 's32[2]{0}', space=sflag, size = 0x8, scoped, tag = 'scoped memory for separator_forward.1']
    #allocation5 [shape = 'u8[131072]{0}', space=vmem, size = 0x20000, scoped, tag = 'input window, operand 3, single buffered']
    #allocation6 [shape = 's32[1]{0}', space=sflag, size = 0x4, scoped, tag = 'scoped memory for separator_forward.1']
    #allocation7 [shape = 'u8[262144]{0}', space=vmem, size = 0x40000, scoped, tag = 'input window, operand 4, single buffered']
    %10 = vsyncpa [#allocation4], 0
    %11 = vsyncpa [#allocation6], 0
    loop: start=0, step=1, limit=6
    $region2: #{separator_forward.1} parent=1 // loop_pre_header
      _
    $region3: #{separator_forward.1} parent=1 // loop_header
      %s13 = sphi 0, %s17
      %p14 = scmp.ge.s32.totalorder %s13, 6
      %s23 = sphi 0, %s25
      %s26 = sphi 0, %s23
      %s27 = sphi 0, %s26
      %s43 = sphi 0, %s27
      %s47 = sphi 0, %s47
      %s49 = sphi 0, %s47
      %s50 = sphi 0, %s49
      %s64 = sphi 0, %s50
      %s68 = sphi 0, %s68
      %s70 = sphi 0, %s68
      %s71 = sphi 0, %s70
      %s85 = sphi 0, %s71
      %s89 = sphi 0, %s89
      %s91 = sphi 0, %s89
      %s92 = sphi 0, %s91
      %s106 = sphi 0, %s92
      %s110 = sphi 0, %s110
      %s112 = sphi 0, %s110
      %s113 = sphi 0, %s112
      %s127 = sphi 0, %s113
      %s133 = sphi 0, %s135
      %s136 = sphi 0, %s133
      %s137 = sphi 0, %s136
      %s153 = sphi 0, %s137
    $region4: #{separator_forward.1} parent=1 // loop_header_branch
      %16 = sbr.rel (%p14) target = $region8
    $region5: #{separator_forward.1} parent=1 // loop_body
      %s18 = ssub.s32 %s13, 1
      %s19 = ssub.s32 %s13, 2
      %s20 = sadd.s32 %s13, 1
      %s21 = ssub.s32 %s13, %s20
      %p22 = scmp.eq.s32.totalorder %s21, 0
      %s24 = sadd.s32 %s23, 1
      %s25 = scalar_select %p22, %s23, %s24
      %p28 = pneg %p22
      %p29 = scmp.eq.s32.totalorder %s13, 3
      %p30 = por %p28, %p29
      %p31 = scmp.ne.s32.totalorder %s23, %s26
      %p32 = scmp.eq.s32.totalorder %s13, 0
      %p33 = por %p31, %p32
      %p34 = scmp.ne.s32.totalorder %s23, %s26
      %p35 = scmp.eq.s32.totalorder %s18, 3
      %p36 = por %p34, %p35
      %p37 = scmp.ne.s32.totalorder %s26, %s27
      %p38 = scmp.eq.s32.totalorder %s18, 0
      %p39 = por %p37, %p38
      %p40 = scmp.ne.s32.totalorder %s26, %s27
      %p41 = scmp.eq.s32.totalorder %s19, 3
      %p42 = por %p40, %p41
      %p44 = scmp.ne.s32.totalorder %s27, %s43
      %p45 = scmp.eq.s32.totalorder %s19, 0
      %p46 = por %p44, %p45
      %s48 = sadd.s32 %s47, 1
      %p51 = scmp.eq.s32.totalorder %s13, 3
      %p52 = scmp.ne.s32.totalorder %s47, %s49
      %p53 = scmp.eq.s32.totalorder %s13, 0
      %p54 = por %p52, %p53
      %p55 = scmp.ne.s32.totalorder %s47, %s49
      %p56 = scmp.eq.s32.totalorder %s18, 3
      %p57 = por %p55, %p56
      %p58 = scmp.ne.s32.totalorder %s49, %s50
      %p59 = scmp.eq.s32.totalorder %s18, 0
      %p60 = por %p58, %p59
      %p61 = scmp.ne.s32.totalorder %s49, %s50
      %p62 = scmp.eq.s32.totalorder %s19, 3
      %p63 = por %p61, %p62
      %p65 = scmp.ne.s32.totalorder %s50, %s64
      %p66 = scmp.eq.s32.totalorder %s19, 0
      %p67 = por %p65, %p66
      %s69 = sadd.s32 %s68, 1
      %p72 = scmp.eq.s32.totalorder %s13, 3
      %p73 = scmp.ne.s32.totalorder %s68, %s70
      %p74 = scmp.eq.s32.totalorder %s13, 0
      %p75 = por %p73, %p74
      %p76 = scmp.ne.s32.totalorder %s68, %s70
      %p77 = scmp.eq.s32.totalorder %s18, 3
      %p78 = por %p76, %p77
      %p79 = scmp.ne.s32.totalorder %s70, %s71
      %p80 = scmp.eq.s32.totalorder %s18, 0
      %p81 = por %p79, %p80
      %p82 = scmp.ne.s32.totalorder %s70, %s71
      %p83 = scmp.eq.s32.totalorder %s19, 3
      %p84 = por %p82, %p83
      %p86 = scmp.ne.s32.totalorder %s71, %s85
      %p87 = scmp.eq.s32.totalorder %s19, 0
      %p88 = por %p86, %p87
      %s90 = sadd.s32 %s89, 1
      %p93 = scmp.eq.s32.totalorder %s13, 3
      %p94 = scmp.ne.s32.totalorder %s89, %s91
      %p95 = scmp.eq.s32.totalorder %s13, 0
      %p96 = por %p94, %p95
      %p97 = scmp.ne.s32.totalorder %s89, %s91
      %p98 = scmp.eq.s32.totalorder %s18, 3
      %p99 = por %p97, %p98
      %p100 = scmp.ne.s32.totalorder %s91, %s92
      %p101 = scmp.eq.s32.totalorder %s18, 0
      %p102 = por %p100, %p101
      %p103 = scmp.ne.s32.totalorder %s91, %s92
      %p104 = scmp.eq.s32.totalorder %s19, 3
      %p105 = por %p103, %p104
      %p107 = scmp.ne.s32.totalorder %s92, %s106
      %p108 = scmp.eq.s32.totalorder %s19, 0
      %p109 = por %p107, %p108
      %s111 = sadd.s32 %s110, 1
      %p114 = scmp.eq.s32.totalorder %s13, 3
      %p115 = scmp.ne.s32.totalorder %s110, %s112
      %p116 = scmp.eq.s32.totalorder %s13, 0
      %p117 = por %p115, %p116
      %p118 = scmp.ne.s32.totalorder %s110, %s112
      %p119 = scmp.eq.s32.totalorder %s18, 3
      %p120 = por %p118, %p119
      %p121 = scmp.ne.s32.totalorder %s112, %s113
      %p122 = scmp.eq.s32.totalorder %s18, 0
      %p123 = por %p121, %p122
      %p124 = scmp.ne.s32.totalorder %s112, %s113
      %p125 = scmp.eq.s32.totalorder %s19, 3
      %p126 = por %p124, %p125
      %p128 = scmp.ne.s32.totalorder %s113, %s127
      %p129 = scmp.eq.s32.totalorder %s19, 0
      %p130 = por %p128, %p129
      %s131 = ssub.s32 %s13, %s20
      %p132 = scmp.eq.s32.totalorder %s131, 0
      %s134 = sadd.s32 %s133, 1
      %s135 = scalar_select %p132, %s133, %s134
      %p138 = pneg %p132
      %p139 = scmp.eq.s32.totalorder %s13, 3
      %p140 = por %p138, %p139
      %p141 = scmp.ne.s32.totalorder %s133, %s136
      %p142 = scmp.eq.s32.totalorder %s13, 0
      %p143 = por %p141, %p142
      %p144 = scmp.ne.s32.totalorder %s133, %s136
      %p145 = scmp.eq.s32.totalorder %s18, 3
      %p146 = por %p144, %p145
      %p147 = scmp.ne.s32.totalorder %s136, %s137
      %p148 = scmp.eq.s32.totalorder %s18, 0
      %p149 = por %p147, %p148
      %p150 = scmp.ne.s32.totalorder %s136, %s137
      %p151 = scmp.eq.s32.totalorder %s19, 3
      %p152 = por %p150, %p151
      %p154 = scmp.ne.s32.totalorder %s137, %s153
      %p155 = scmp.eq.s32.totalorder %s19, 0
      %p156 = por %p154, %p155
      %p157 = scmp.le.s32.totalorder 1, %s13
      %p158 = scmp.lt.s32.totalorder %s13, 5
      %p159 = pnand %p157, %p158
      %p160 = pneg %p159
      // Predicated region
      $region9: #{separator_forward.1} parent=5 // pred_check
        _
      $region10: #{separator_forward.1} parent=5 // pred_check_branch
        %162 = sbr.rel (%p159) target = $region12
      $region11: #{separator_forward.1} parent=5 // pred_region
        %s163 = ssub.s32 %s13, 1
        // Predicated region
        $region13: #{separator_forward.1} parent=11 // pred_check
          %p164 = pneg %p60
        $region14: #{separator_forward.1} parent=11 // pred_check_branch
          %166 = sbr.rel (%p164) target = $region16
        $region15: #{separator_forward.1} parent=11 // pred_region
          _
        $region16: #{separator_forward.1} parent=11 // pred_fallthru
          _
        // Predicated region
        $region17: #{separator_forward.1} parent=11 // pred_check
          %p167 = pneg %p81
        $region18: #{separator_forward.1} parent=11 // pred_check_branch
          %169 = sbr.rel (%p167) target = $region20
        $region19: #{separator_forward.1} parent=11 // pred_region
          %s171 = ssub.s32 4096, 4096
          %172 = vsyncadd [#allocation4], %s171
          %s173 = sshll.u32 [#allocation3], 4
          %s174 = int_to_ptr.vmem [resolvable:$true] %s173
          %179 = dma.hbm_to_vmem [thread:$0]  %s2, 4096, %s174, [#allocation4], 256, 256, 16
        $region20: #{separator_forward.1} parent=11 // pred_fallthru
          _
        // Predicated region
        $region21: #{separator_forward.1} parent=11 // pred_check
          %p180 = pneg %p102
        $region22: #{separator_forward.1} parent=11 // pred_check_branch
          %182 = sbr.rel (%p180) target = $region24
        $region23: #{separator_forward.1} parent=11 // pred_region
          %s184 = ssub.s32 4096, 4096
          %185 = vsyncadd [#allocation6], %s184
          %s186 = sshll.u32 [#allocation5], 4
          %s187 = int_to_ptr.vmem [resolvable:$true] %s186
          %192 = dma.hbm_to_vmem [thread:$0]  %s3, 4096, %s187, [#allocation6], 256, 256, 16
        $region24: #{separator_forward.1} parent=11 // pred_fallthru
          _
        // Predicated region
        $region25: #{separator_forward.1} parent=11 // pred_check
          %p193 = pneg %p123
        $region26: #{separator_forward.1} parent=11 // pred_check_branch
          %195 = sbr.rel (%p193) target = $region28
        $region27: #{separator_forward.1} parent=11 // pred_region
          %s197 = ssub.s32 8192, 8192
          %198 = vsyncadd [#allocation6], %s197
          %s199 = sshll.u32 [#allocation7], 4
          %s200 = int_to_ptr.vmem [resolvable:$true] %s199
          %205 = dma.hbm_to_vmem [thread:$0]  %s4, 8192, %s200, [#allocation6], 128, 128, 8
        $region28: #{separator_forward.1} parent=11 // pred_fallthru
          _
      $region12: #{separator_forward.1} parent=5 // pred_fallthru
        _
      %p206 = scmp.lt.s32.totalorder %s13, 4
      // Predicated region
      $region29: #{separator_forward.1} parent=5 // pred_check
        %p207 = pneg %p206
      $region30: #{separator_forward.1} parent=5 // pred_check_branch
        %209 = sbr.rel (%p207) target = $region32
      $region31: #{separator_forward.1} parent=5 // pred_region
        // Predicated region
        $region33: #{separator_forward.1} parent=31 // pred_check
          %p210 = pneg %p33
        $region34: #{separator_forward.1} parent=31 // pred_check_branch
          %212 = sbr.rel (%p210) target = $region36
        $region35: #{separator_forward.1} parent=31 // pred_region
          %s213 = smul.u32 4, %s13
          %p214 = scmp.lt.s32.totalorder %s213, 15
          %s215 = scalar_select %p214, %s213, 15
          %s216 = smul.addr %s215, 2
          %s217 = smul.addr %s216, 8
          %s218 = scalar_lea.vmem %s0, %s217
          %s219 = smul.u32 4, %s13
        $region36: #{separator_forward.1} parent=31 // pred_fallthru
          _
      $region32: #{separator_forward.1} parent=5 // pred_fallthru
        _
      %p220 = scmp.le.s32.totalorder 1, %s13
      %p221 = scmp.lt.s32.totalorder %s13, 5
      %p222 = pnand %p220, %p221
      %p223 = pneg %p222
      // Predicated region
      $region37: #{separator_forward.1} parent=5 // pred_check
        _
      $region38: #{separator_forward.1} parent=5 // pred_check_branch
        %225 = sbr.rel (%p222) target = $region40
      $region39: #{separator_forward.1} parent=5 // pred_region
        %s226 = ssub.s32 %s13, 1
        // Predicated region
        $region41: #{separator_forward.1} parent=39 // pred_check
          %p227 = pneg %p81
        $region42: #{separator_forward.1} parent=39 // pred_check_branch
          %229 = sbr.rel (%p227) target = $region44
        $region43: #{separator_forward.1} parent=39 // pred_region
          %230 = dma.done [#allocation4], 4096
        $region44: #{separator_forward.1} parent=39 // pred_fallthru
          _
        // Predicated region
        $region45: #{separator_forward.1} parent=39 // pred_check
          %p231 = pneg %p102
        $region46: #{separator_forward.1} parent=39 // pred_check_branch
          %233 = sbr.rel (%p231) target = $region48
        $region47: #{separator_forward.1} parent=39 // pred_region
          %234 = dma.done [#allocation6], 4096
        $region48: #{separator_forward.1} parent=39 // pred_fallthru
          _
        // Predicated region
        $region49: #{separator_forward.1} parent=39 // pred_check
          %p235 = pneg %p123
        $region50: #{separator_forward.1} parent=39 // pred_check_branch
          %237 = sbr.rel (%p235) target = $region52
        $region51: #{separator_forward.1} parent=39 // pred_region
          %238 = dma.done [#allocation6], 8192
        $region52: #{separator_forward.1} parent=39 // pred_fallthru
          _
        %s239 = smul.u32 4, %s18
        %p240 = scmp.lt.s32.totalorder %s239, 15
        %s241 = scalar_select %p240, %s239, 15
        %s242 = smul.addr %s241, 2
        %s243 = smul.addr %s242, 8
        %s244 = scalar_lea.vmem %s0, %s243
        %p245 = pneg %p39
        %p246 = pneg %p36
        %p247 = pneg %p60
        %p248 = pneg %p57
        %p249 = pneg %p81
        %p250 = pneg %p78
        %p251 = pneg %p102
        %p252 = pneg %p99
        %p253 = pneg %p123
        %p254 = pneg %p120
        %p255 = pneg %p149
        %p256 = pneg %p146
        %s257 = smul.u32 16, %s18
        %p258 = scmp.lt.s32.totalorder %s257, 63
        %s259 = scalar_select %p258, %s257, 63
        %s260 = smul.addr %s259, 2
        %s261 = smul.addr %s260, 8
        %s262 = scalar_lea.vmem %s5, %s261
        %s263 = smul.u32 4, %s18
        %p264 = scmp.lt.s32.totalorder %s263, 15
        %s265 = scalar_select %p264, %s263, 15
        %s266 = smul.addr %s265, 2
        %s267 = smul.addr %s266, 8
        %s268 = scalar_lea.vmem %s0, %s267
        %s269 = smul.u32 4, %s18
        %s270 = smul.u32 16, %s18
        %p271 = scmp.lt.s32.totalorder %s270, 63
        %s272 = scalar_select %p271, %s270, 63
        %s273 = smul.addr %s272, 2
        %s274 = smul.addr %s273, 8
        %s275 = scalar_lea.vmem %s5, %s274
        %s276 = smul.u32 16, %s18
        %v278 = vld [vmem:[%s268] sm:$0xff]
        %v279 = vld [vmem:[%s268 + $0x8] sm:$0xff]
        %v280 = vld [vmem:[%s268 + $0x10] sm:$0xff]
        %v281 = vld [vmem:[%s268 + $0x18] sm:$0xff]
        %v282 = vld [vmem:[%s268 + $0x20] sm:$0xff]
        %v283 = vld [vmem:[%s268 + $0x28] sm:$0xff]
        %v284 = vld [vmem:[%s268 + $0x30] sm:$0xff]
        %v285 = vld [vmem:[%s268 + $0x38] sm:$0xff]
        %v286 = vpack.c.bf16 %v280, %v278
        %v287 = vpack.c.bf16 %v281, %v279
        %v288 = vpack.c.bf16 %v284, %v282
        %v289 = vpack.c.bf16 %v285, %v283
        %v290 = vld [vmem:[%s1] sm:$0xff]
        %v291 = vld [vmem:[%s1 + $0x8] sm:$0xff]
        %v292 = vld [vmem:[%s1 + $0x10] sm:$0xff]
        %v293 = vld [vmem:[%s1 + $0x18] sm:$0xff]
        %v294 = vld [vmem:[%s1 + $0x20] sm:$0xff]
        %v295 = vld [vmem:[%s1 + $0x28] sm:$0xff]
        %v296 = vld [vmem:[%s1 + $0x30] sm:$0xff]
        %v297 = vld [vmem:[%s1 + $0x38] sm:$0xff]
        %v298 = vld [vmem:[%s1 + $0x40] sm:$0xff]
        %v299 = vld [vmem:[%s1 + $0x48] sm:$0xff]
        %v300 = vld [vmem:[%s1 + $0x50] sm:$0xff]
        %v301 = vld [vmem:[%s1 + $0x58] sm:$0xff]
        %v302 = vld [vmem:[%s1 + $0x60] sm:$0xff]
        %v303 = vld [vmem:[%s1 + $0x68] sm:$0xff]
        %v304 = vld [vmem:[%s1 + $0x70] sm:$0xff]
        %v305 = vld [vmem:[%s1 + $0x78] sm:$0xff]
        %v306 = vld [vmem:[%s1 + $0x80] sm:$0xff]
        %v307 = vld [vmem:[%s1 + $0x88] sm:$0xff]
        %v308 = vld [vmem:[%s1 + $0x90] sm:$0xff]
        %v309 = vld [vmem:[%s1 + $0x98] sm:$0xff]
        %v310 = vld [vmem:[%s1 + $0xa0] sm:$0xff]
        %v311 = vld [vmem:[%s1 + $0xa8] sm:$0xff]
        %v312 = vld [vmem:[%s1 + $0xb0] sm:$0xff]
        %v313 = vld [vmem:[%s1 + $0xb8] sm:$0xff]
        %v314 = vld [vmem:[%s1 + $0xc0] sm:$0xff]
        %v315 = vld [vmem:[%s1 + $0xc8] sm:$0xff]
        %v316 = vld [vmem:[%s1 + $0xd0] sm:$0xff]
        %v317 = vld [vmem:[%s1 + $0xd8] sm:$0xff]
        %v318 = vld [vmem:[%s1 + $0xe0] sm:$0xff]
        %v319 = vld [vmem:[%s1 + $0xe8] sm:$0xff]
        %v320 = vld [vmem:[%s1 + $0xf0] sm:$0xff]
        %v321 = vld [vmem:[%s1 + $0xf8] sm:$0xff]
        %v322 = vld [vmem:[%s1 + $0x100] sm:$0xff]
        %v323 = vld [vmem:[%s1 + $0x108] sm:$0xff]
        %v324 = vld [vmem:[%s1 + $0x110] sm:$0xff]
        %v325 = vld [vmem:[%s1 + $0x118] sm:$0xff]
        %v326 = vld [vmem:[%s1 + $0x120] sm:$0xff]
        %v327 = vld [vmem:[%s1 + $0x128] sm:$0xff]
        %v328 = vld [vmem:[%s1 + $0x130] sm:$0xff]
        %v329 = vld [vmem:[%s1 + $0x138] sm:$0xff]
        %v330 = vld [vmem:[%s1 + $0x140] sm:$0xff]
        %v331 = vld [vmem:[%s1 + $0x148] sm:$0xff]
        %v332 = vld [vmem:[%s1 + $0x150] sm:$0xff]
        %v333 = vld [vmem:[%s1 + $0x158] sm:$0xff]
        %v334 = vld [vmem:[%s1 + $0x160] sm:$0xff]
        %v335 = vld [vmem:[%s1 + $0x168] sm:$0xff]
        %v336 = vld [vmem:[%s1 + $0x170] sm:$0xff]
        %v337 = vld [vmem:[%s1 + $0x178] sm:$0xff]
        %v338 = vld [vmem:[%s1 + $0x180] sm:$0xff]
        %v339 = vld [vmem:[%s1 + $0x188] sm:$0xff]
        %v340 = vld [vmem:[%s1 + $0x190] sm:$0xff]
        %v341 = vld [vmem:[%s1 + $0x198] sm:$0xff]
        %v342 = vld [vmem:[%s1 + $0x1a0] sm:$0xff]
        %v343 = vld [vmem:[%s1 + $0x1a8] sm:$0xff]
        %v344 = vld [vmem:[%s1 + $0x1b0] sm:$0xff]
        %v345 = vld [vmem:[%s1 + $0x1b8] sm:$0xff]
        %v346 = vld [vmem:[%s1 + $0x1c0] sm:$0xff]
        %v347 = vld [vmem:[%s1 + $0x1c8] sm:$0xff]
        %v348 = vld [vmem:[%s1 + $0x1d0] sm:$0xff]
        %v349 = vld [vmem:[%s1 + $0x1d8] sm:$0xff]
        %v350 = vld [vmem:[%s1 + $0x1e0] sm:$0xff]
        %v351 = vld [vmem:[%s1 + $0x1e8] sm:$0xff]
        %v352 = vld [vmem:[%s1 + $0x1f0] sm:$0xff]
        %v353 = vld [vmem:[%s1 + $0x1f8] sm:$0xff]
        %v418 = vunpack.c.l.b16 %v290
        %v419 = vunpack.c.h.b16 %v290
        %v420 = vunpack.c.l.b16 %v291
        %v421 = vunpack.c.h.b16 %v291
        %v422 = vunpack.c.l.b16 %v292
        %v423 = vunpack.c.h.b16 %v292
        %v424 = vunpack.c.l.b16 %v293
        %v425 = vunpack.c.h.b16 %v293
        %v426 = vunpack.c.l.b16 %v294
        %v427 = vunpack.c.h.b16 %v294
        %v428 = vunpack.c.l.b16 %v295
        %v429 = vunpack.c.h.b16 %v295
        %v430 = vunpack.c.l.b16 %v296
        %v431 = vunpack.c.h.b16 %v296
        %v432 = vunpack.c.l.b16 %v297
        %v433 = vunpack.c.h.b16 %v297
        %v434 = vunpack.c.l.b16 %v298
        %v435 = vunpack.c.h.b16 %v298
        %v436 = vunpack.c.l.b16 %v299
        %v437 = vunpack.c.h.b16 %v299
        %v438 = vunpack.c.l.b16 %v300
        %v439 = vunpack.c.h.b16 %v300
        %v440 = vunpack.c.l.b16 %v301
        %v441 = vunpack.c.h.b16 %v301
        %v442 = vunpack.c.l.b16 %v302
        %v443 = vunpack.c.h.b16 %v302
        %v444 = vunpack.c.l.b16 %v303
        %v445 = vunpack.c.h.b16 %v303
        %v446 = vunpack.c.l.b16 %v304
        %v447 = vunpack.c.h.b16 %v304
        %v448 = vunpack.c.l.b16 %v305
        %v449 = vunpack.c.h.b16 %v305
        %v450 = vunpack.c.l.b16 %v306
        %v451 = vunpack.c.h.b16 %v306
        %v452 = vunpack.c.l.b16 %v307
        %v453 = vunpack.c.h.b16 %v307
        %v454 = vunpack.c.l.b16 %v308
        %v455 = vunpack.c.h.b16 %v308
        %v456 = vunpack.c.l.b16 %v309
        %v457 = vunpack.c.h.b16 %v309
        %v458 = vunpack.c.l.b16 %v310
        %v459 = vunpack.c.h.b16 %v310
        %v460 = vunpack.c.l.b16 %v311
        %v461 = vunpack.c.h.b16 %v311
        %v462 = vunpack.c.l.b16 %v312
        %v463 = vunpack.c.h.b16 %v312
        %v464 = vunpack.c.l.b16 %v313
        %v465 = vunpack.c.h.b16 %v313
        %v466 = vunpack.c.l.b16 %v314
        %v467 = vunpack.c.h.b16 %v314
        %v468 = vunpack.c.l.b16 %v315
        %v469 = vunpack.c.h.b16 %v315
        %v470 = vunpack.c.l.b16 %v316
        %v471 = vunpack.c.h.b16 %v316
        %v472 = vunpack.c.l.b16 %v317
        %v473 = vunpack.c.h.b16 %v317
        %v474 = vunpack.c.l.b16 %v318
        %v475 = vunpack.c.h.b16 %v318
        %v476 = vunpack.c.l.b16 %v319
        %v477 = vunpack.c.h.b16 %v319
        %v478 = vunpack.c.l.b16 %v320
        %v479 = vunpack.c.h.b16 %v320
        %v480 = vunpack.c.l.b16 %v321
        %v481 = vunpack.c.h.b16 %v321
        %v482 = vunpack.c.l.b16 %v322
        %v483 = vunpack.c.h.b16 %v322
        %v484 = vunpack.c.l.b16 %v323
        %v485 = vunpack.c.h.b16 %v323
        %v486 = vunpack.c.l.b16 %v324
        %v487 = vunpack.c.h.b16 %v324
        %v488 = vunpack.c.l.b16 %v325
        %v489 = vunpack.c.h.b16 %v325
        %v490 = vunpack.c.l.b16 %v326
        %v491 = vunpack.c.h.b16 %v326
        %v492 = vunpack.c.l.b16 %v327
        %v493 = vunpack.c.h.b16 %v327
        %v494 = vunpack.c.l.b16 %v328
        %v495 = vunpack.c.h.b16 %v328
        %v496 = vunpack.c.l.b16 %v329
        %v497 = vunpack.c.h.b16 %v329
        %v498 = vunpack.c.l.b16 %v330
        %v499 = vunpack.c.h.b16 %v330
        %v500 = vunpack.c.l.b16 %v331
        %v501 = vunpack.c.h.b16 %v331
        %v502 = vunpack.c.l.b16 %v332
        %v503 = vunpack.c.h.b16 %v332
        %v504 = vunpack.c.l.b16 %v333
        %v505 = vunpack.c.h.b16 %v333
        %v506 = vunpack.c.l.b16 %v334
        %v507 = vunpack.c.h.b16 %v334
        %v508 = vunpack.c.l.b16 %v335
        %v509 = vunpack.c.h.b16 %v335
        %v510 = vunpack.c.l.b16 %v336
        %v511 = vunpack.c.h.b16 %v336
        %v512 = vunpack.c.l.b16 %v337
        %v513 = vunpack.c.h.b16 %v337
        %v514 = vunpack.c.l.b16 %v338
        %v515 = vunpack.c.h.b16 %v338
        %v516 = vunpack.c.l.b16 %v339
        %v517 = vunpack.c.h.b16 %v339
        %v518 = vunpack.c.l.b16 %v340
        %v519 = vunpack.c.h.b16 %v340
        %v520 = vunpack.c.l.b16 %v341
        %v521 = vunpack.c.h.b16 %v341
        %v522 = vunpack.c.l.b16 %v342
        %v523 = vunpack.c.h.b16 %v342
        %v524 = vunpack.c.l.b16 %v343
        %v525 = vunpack.c.h.b16 %v343
        %v526 = vunpack.c.l.b16 %v344
        %v527 = vunpack.c.h.b16 %v344
        %v528 = vunpack.c.l.b16 %v345
        %v529 = vunpack.c.h.b16 %v345
        %v530 = vunpack.c.l.b16 %v346
        %v531 = vunpack.c.h.b16 %v346
        %v532 = vunpack.c.l.b16 %v347
        %v533 = vunpack.c.h.b16 %v347
        %v534 = vunpack.c.l.b16 %v348
        %v535 = vunpack.c.h.b16 %v348
        %v536 = vunpack.c.l.b16 %v349
        %v537 = vunpack.c.h.b16 %v349
        %v538 = vunpack.c.l.b16 %v350
        %v539 = vunpack.c.h.b16 %v350
        %v540 = vunpack.c.l.b16 %v351
        %v541 = vunpack.c.h.b16 %v351
        %v542 = vunpack.c.l.b16 %v352
        %v543 = vunpack.c.h.b16 %v352
        %v544 = vunpack.c.l.b16 %v353
        %v545 = vunpack.c.h.b16 %v353
        %v546 = vpack.c.b16 %v422, %v418
        %v547 = vpack.c.b16 %v423, %v419
        %v548 = vpack.c.b16 %v424, %v420
        %v549 = vpack.c.b16 %v425, %v421
        %v550 = vpack.c.b16 %v430, %v426
        %v551 = vpack.c.b16 %v431, %v427
        %v552 = vpack.c.b16 %v432, %v428
        %v553 = vpack.c.b16 %v433, %v429
        %v554 = vpack.c.b16 %v438, %v434
        %v555 = vpack.c.b16 %v439, %v435
        %v556 = vpack.c.b16 %v440, %v436
        %v557 = vpack.c.b16 %v441, %v437
        %v558 = vpack.c.b16 %v446, %v442
        %v559 = vpack.c.b16 %v447, %v443
        %v560 = vpack.c.b16 %v448, %v444
        %v561 = vpack.c.b16 %v449, %v445
        %v562 = vpack.c.b16 %v454, %v450
        %v563 = vpack.c.b16 %v455, %v451
        %v564 = vpack.c.b16 %v456, %v452
        %v565 = vpack.c.b16 %v457, %v453
        %v566 = vpack.c.b16 %v462, %v458
        %v567 = vpack.c.b16 %v463, %v459
        %v568 = vpack.c.b16 %v464, %v460
        %v569 = vpack.c.b16 %v465, %v461
        %v570 = vpack.c.b16 %v470, %v466
        %v571 = vpack.c.b16 %v471, %v467
        %v572 = vpack.c.b16 %v472, %v468
        %v573 = vpack.c.b16 %v473, %v469
        %v574 = vpack.c.b16 %v478, %v474
        %v575 = vpack.c.b16 %v479, %v475
        %v576 = vpack.c.b16 %v480, %v476
        %v577 = vpack.c.b16 %v481, %v477
        %v578 = vpack.c.b16 %v486, %v482
        %v579 = vpack.c.b16 %v487, %v483
        %v580 = vpack.c.b16 %v488, %v484
        %v581 = vpack.c.b16 %v489, %v485
        %v582 = vpack.c.b16 %v494, %v490
        %v583 = vpack.c.b16 %v495, %v491
        %v584 = vpack.c.b16 %v496, %v492
        %v585 = vpack.c.b16 %v497, %v493
        %v586 = vpack.c.b16 %v502, %v498
        %v587 = vpack.c.b16 %v503, %v499
        %v588 = vpack.c.b16 %v504, %v500
        %v589 = vpack.c.b16 %v505, %v501
        %v590 = vpack.c.b16 %v510, %v506
        %v591 = vpack.c.b16 %v511, %v507
        %v592 = vpack.c.b16 %v512, %v508
        %v593 = vpack.c.b16 %v513, %v509
        %v594 = vpack.c.b16 %v518, %v514
        %v595 = vpack.c.b16 %v519, %v515
        %v596 = vpack.c.b16 %v520, %v516
        %v597 = vpack.c.b16 %v521, %v517
        %v598 = vpack.c.b16 %v526, %v522
        %v599 = vpack.c.b16 %v527, %v523
        %v600 = vpack.c.b16 %v528, %v524
        %v601 = vpack.c.b16 %v529, %v525
        %v602 = vpack.c.b16 %v534, %v530
        %v603 = vpack.c.b16 %v535, %v531
        %v604 = vpack.c.b16 %v536, %v532
        %v605 = vpack.c.b16 %v537, %v533
        %v606 = vpack.c.b16 %v542, %v538
        %v607 = vpack.c.b16 %v543, %v539
        %v608 = vpack.c.b16 %v544, %v540
        %v609 = vpack.c.b16 %v545, %v541
        %674 = vmatprep.subr.bf16.mxu0 %v547
        %675 = vmatpush1.bf16.msra.mxu0 %v546
        %676 = vmatprep.subr.bf16.mxu0 %v551
        %677 = vmatpush1.bf16.msra.mxu0 %v550
        %678 = vmatprep.subr.bf16.mxu0 %v555
        %679 = vmatpush1.bf16.msra.mxu0 %v554
        %680 = vmatprep.subr.bf16.mxu0 %v559
        %681 = vmatpush1.bf16.msra.mxu0 %v558
        %682 = vmatprep.subr.bf16.mxu0 %v563
        %683 = vmatpush1.bf16.msra.mxu0 %v562
        %684 = vmatprep.subr.bf16.mxu0 %v567
        %685 = vmatpush1.bf16.msra.mxu0 %v566
        %686 = vmatprep.subr.bf16.mxu0 %v571
        %687 = vmatpush1.bf16.msra.mxu0 %v570
        %688 = vmatprep.subr.bf16.mxu0 %v575
        %689 = vmatpush1.bf16.msra.mxu0 %v574
        %690 = vmatprep.subr.bf16.mxu0 %v579
        %691 = vmatpush1.bf16.msra.mxu0 %v578
        %692 = vmatprep.subr.bf16.mxu0 %v583
        %693 = vmatpush1.bf16.msra.mxu0 %v582
        %694 = vmatprep.subr.bf16.mxu0 %v587
        %695 = vmatpush1.bf16.msra.mxu0 %v586
        %696 = vmatprep.subr.bf16.mxu0 %v591
        %697 = vmatpush1.bf16.msra.mxu0 %v590
        %698 = vmatprep.subr.bf16.mxu0 %v595
        %699 = vmatpush1.bf16.msra.mxu0 %v594
        %700 = vmatprep.subr.bf16.mxu0 %v599
        %701 = vmatpush1.bf16.msra.mxu0 %v598
        %702 = vmatprep.subr.bf16.mxu0 %v603
        %703 = vmatpush1.bf16.msra.mxu0 %v602
        %704 = vmatprep.subr.bf16.mxu0 %v607
        %705 = vmatpush1.bf16.msra.mxu0 %v606
        %706 = vmatprep.mubr.bf16.mxu0 %v287
        %707 = vmatmul.mubr.bf16.gmra.mrb[0].mxu0 %v286
        %v708 = vpop.f32.mrb[0].mxu0
        %v709 = vadd.f32 0.0, %v708
        %v710 = vpop.f32.mrb[0].mxu0
        %v711 = vadd.f32 0.0, %v710
        %v712 = vpop.f32.mrb[0].mxu0
        %v713 = vadd.f32 0.0, %v712
        %v714 = vpop.f32.mrb[0].mxu0
        %v715 = vadd.f32 0.0, %v714
        %716 = vmatprep.mubr.bf16.mxu0 %v289
        %717 = vmatmul.mubr.bf16.gmra.mrb[0].mxu0 %v288
        %v718 = vpop.f32.mrb[0].mxu0
        %v719 = vadd.f32 0.0, %v718
        %v720 = vpop.f32.mrb[0].mxu0
        %v721 = vadd.f32 0.0, %v720
        %v722 = vpop.f32.mrb[0].mxu0
        %v723 = vadd.f32 0.0, %v722
        %v724 = vpop.f32.mrb[0].mxu0
        %v725 = vadd.f32 0.0, %v724
        %726 = vdwg.mxu0
        %727 = vmatprep.subr.bf16.mxu0 %v549
        %728 = vmatpush1.bf16.msra.mxu0 %v548
        %729 = vmatprep.subr.bf16.mxu0 %v553
        %730 = vmatpush1.bf16.msra.mxu0 %v552
        %731 = vmatprep.subr.bf16.mxu0 %v557
        %732 = vmatpush1.bf16.msra.mxu0 %v556
        %733 = vmatprep.subr.bf16.mxu0 %v561
        %734 = vmatpush1.bf16.msra.mxu0 %v560
        %735 = vmatprep.subr.bf16.mxu0 %v565
        %736 = vmatpush1.bf16.msra.mxu0 %v564
        %737 = vmatprep.subr.bf16.mxu0 %v569
        %738 = vmatpush1.bf16.msra.mxu0 %v568
        %739 = vmatprep.subr.bf16.mxu0 %v573
        %740 = vmatpush1.bf16.msra.mxu0 %v572
        %741 = vmatprep.subr.bf16.mxu0 %v577
        %742 = vmatpush1.bf16.msra.mxu0 %v576
        %743 = vmatprep.subr.bf16.mxu0 %v581
        %744 = vmatpush1.bf16.msra.mxu0 %v580
        %745 = vmatprep.subr.bf16.mxu0 %v585
        %746 = vmatpush1.bf16.msra.mxu0 %v584
        %747 = vmatprep.subr.bf16.mxu0 %v589
        %748 = vmatpush1.bf16.msra.mxu0 %v588
        %749 = vmatprep.subr.bf16.mxu0 %v593
        %750 = vmatpush1.bf16.msra.mxu0 %v592
        %751 = vmatprep.subr.bf16.mxu0 %v597
        %752 = vmatpush1.bf16.msra.mxu0 %v596
        %753 = vmatprep.subr.bf16.mxu0 %v601
        %754 = vmatpush1.bf16.msra.mxu0 %v600
        %755 = vmatprep.subr.bf16.mxu0 %v605
        %756 = vmatpush1.bf16.msra.mxu0 %v604
        %757 = vmatprep.subr.bf16.mxu0 %v609
        %758 = vmatpush1.bf16.msra.mxu0 %v608
        %759 = vmatprep.mubr.bf16.mxu0 %v287
        %760 = vmatmul.mubr.bf16.gmra.mrb[0].mxu0 %v286
        %v761 = vpop.f32.mrb[0].mxu0
        %v762 = vadd.f32 0.0, %v761
        %v763 = vpop.f32.mrb[0].mxu0
        %v764 = vadd.f32 0.0, %v763
        %v765 = vpop.f32.mrb[0].mxu0
        %v766 = vadd.f32 0.0, %v765
        %v767 = vpop.f32.mrb[0].mxu0
        %v768 = vadd.f32 0.0, %v767
        %769 = vmatprep.mubr.bf16.mxu0 %v289
        %770 = vmatmul.mubr.bf16.gmra.mrb[0].mxu0 %v288
        %v771 = vpop.f32.mrb[0].mxu0
        %v772 = vadd.f32 0.0, %v771
        %v773 = vpop.f32.mrb[0].mxu0
        %v774 = vadd.f32 0.0, %v773
        %v775 = vpop.f32.mrb[0].mxu0
        %v776 = vadd.f32 0.0, %v775
        %v777 = vpop.f32.mrb[0].mxu0
        %v778 = vadd.f32 0.0, %v777
        %779 = vdwg.mxu0
        %v780 = vmul.f32 %v709, %v709
        %v781 = vmul.f32 %v711, %v711
        %v782 = vmul.f32 %v713, %v713
        %v783 = vmul.f32 %v715, %v715
        %v784 = vmul.f32 %v719, %v719
        %v785 = vmul.f32 %v721, %v721
        %v786 = vmul.f32 %v723, %v723
        %v787 = vmul.f32 %v725, %v725
        %v788 = vmul.f32 %v762, %v762
        %v789 = vmul.f32 %v764, %v764
        %v790 = vmul.f32 %v766, %v766
        %v791 = vmul.f32 %v768, %v768
        %v792 = vmul.f32 %v772, %v772
        %v793 = vmul.f32 %v774, %v774
        %v794 = vmul.f32 %v776, %v776
        %v795 = vmul.f32 %v778, %v778
        %v796 = vadd.f32 %v780, %v788
        %v797 = vadd.f32 %v781, %v789
        %v798 = vadd.f32 %v782, %v790
        %v799 = vadd.f32 %v783, %v791
        %v800 = vadd.f32 %v784, %v792
        %v801 = vadd.f32 %v785, %v793
        %v802 = vadd.f32 %v786, %v794
        %v803 = vadd.f32 %v787, %v795
        %v804 = vrsqrt.pop %v796
        %v805 = vmul.f32 %v796, %v804
        %vm806 = vcmp.eq.f32.partialorder %v796, inf
        %v807 = vsel %vm806, %v796, %v805
        %vm808 = vcmp.eq.f32.partialorder %v796, 0.0
        %v809 = vand.u32 %v796, 2147483648
        %v810 = vsel %vm808, %v809, %v807
        %v811 = vrsqrt.pop %v797
        %v812 = vmul.f32 %v797, %v811
        %vm813 = vcmp.eq.f32.partialorder %v797, inf
        %v814 = vsel %vm813, %v797, %v812
        %vm815 = vcmp.eq.f32.partialorder %v797, 0.0
        %v816 = vand.u32 %v797, 2147483648
        %v817 = vsel %vm815, %v816, %v814
        %v818 = vrsqrt.pop %v798
        %v819 = vmul.f32 %v798, %v818
        %vm820 = vcmp.eq.f32.partialorder %v798, inf
        %v821 = vsel %vm820, %v798, %v819
        %vm822 = vcmp.eq.f32.partialorder %v798, 0.0
        %v823 = vand.u32 %v798, 2147483648
        %v824 = vsel %vm822, %v823, %v821
        %v825 = vrsqrt.pop %v799
        %v826 = vmul.f32 %v799, %v825
        %vm827 = vcmp.eq.f32.partialorder %v799, inf
        %v828 = vsel %vm827, %v799, %v826
        %vm829 = vcmp.eq.f32.partialorder %v799, 0.0
        %v830 = vand.u32 %v799, 2147483648
        %v831 = vsel %vm829, %v830, %v828
        %v832 = vrsqrt.pop %v800
        %v833 = vmul.f32 %v800, %v832
        %vm834 = vcmp.eq.f32.partialorder %v800, inf
        %v835 = vsel %vm834, %v800, %v833
        %vm836 = vcmp.eq.f32.partialorder %v800, 0.0
        %v837 = vand.u32 %v800, 2147483648
        %v838 = vsel %vm836, %v837, %v835
        %v839 = vrsqrt.pop %v801
        %v840 = vmul.f32 %v801, %v839
        %vm841 = vcmp.eq.f32.partialorder %v801, inf
        %v842 = vsel %vm841, %v801, %v840
        %vm843 = vcmp.eq.f32.partialorder %v801, 0.0
        %v844 = vand.u32 %v801, 2147483648
        %v845 = vsel %vm843, %v844, %v842
        %v846 = vrsqrt.pop %v802
        %v847 = vmul.f32 %v802, %v846
        %vm848 = vcmp.eq.f32.partialorder %v802, inf
        %v849 = vsel %vm848, %v802, %v847
        %vm850 = vcmp.eq.f32.partialorder %v802, 0.0
        %v851 = vand.u32 %v802, 2147483648
        %v852 = vsel %vm850, %v851, %v849
        %v853 = vrsqrt.pop %v803
        %v854 = vmul.f32 %v803, %v853
        %vm855 = vcmp.eq.f32.partialorder %v803, inf
        %v856 = vsel %vm855, %v803, %v854
        %vm857 = vcmp.eq.f32.partialorder %v803, 0.0
        %v858 = vand.u32 %v803, 2147483648
        %v859 = vsel %vm857, %v858, %v856
        %v860 = vpack.c.bf16 %v824, %v810
        %v861 = vpack.c.bf16 %v831, %v817
        %v862 = vpack.c.bf16 %v852, %v838
        %v863 = vpack.c.bf16 %v859, %v845
        %v864 = vld [vmem:[#allocation3] sm:$0xff]
        %v865 = vld [vmem:[#allocation3 + $0x8] sm:$0xff]
        %v866 = vld [vmem:[#allocation3 + $0x10] sm:$0xff]
        %v867 = vld [vmem:[#allocation3 + $0x18] sm:$0xff]
        %v868 = vld [vmem:[#allocation3 + $0x20] sm:$0xff]
        %v869 = vld [vmem:[#allocation3 + $0x28] sm:$0xff]
        %v870 = vld [vmem:[#allocation3 + $0x30] sm:$0xff]
        %v871 = vld [vmem:[#allocation3 + $0x38] sm:$0xff]
        %v872 = vld [vmem:[#allocation3 + $0x40] sm:$0xff]
        %v873 = vld [vmem:[#allocation3 + $0x48] sm:$0xff]
        %v874 = vld [vmem:[#allocation3 + $0x50] sm:$0xff]
        %v875 = vld [vmem:[#allocation3 + $0x58] sm:$0xff]
        %v876 = vld [vmem:[#allocation3 + $0x60] sm:$0xff]
        %v877 = vld [vmem:[#allocation3 + $0x68] sm:$0xff]
        %v878 = vld [vmem:[#allocation3 + $0x70] sm:$0xff]
        %v879 = vld [vmem:[#allocation3 + $0x78] sm:$0xff]
        %v880 = vld [vmem:[#allocation3 + $0x80] sm:$0xff]
        %v881 = vld [vmem:[#allocation3 + $0x88] sm:$0xff]
        %v882 = vld [vmem:[#allocation3 + $0x90] sm:$0xff]
        %v883 = vld [vmem:[#allocation3 + $0x98] sm:$0xff]
        %v884 = vld [vmem:[#allocation3 + $0xa0] sm:$0xff]
        %v885 = vld [vmem:[#allocation3 + $0xa8] sm:$0xff]
        %v886 = vld [vmem:[#allocation3 + $0xb0] sm:$0xff]
        %v887 = vld [vmem:[#allocation3 + $0xb8] sm:$0xff]
        %v888 = vld [vmem:[#allocation3 + $0xc0] sm:$0xff]
        %v889 = vld [vmem:[#allocation3 + $0xc8] sm:$0xff]
        %v890 = vld [vmem:[#allocation3 + $0xd0] sm:$0xff]
        %v891 = vld [vmem:[#allocation3 + $0xd8] sm:$0xff]
        %v892 = vld [vmem:[#allocation3 + $0xe0] sm:$0xff]
        %v893 = vld [vmem:[#allocation3 + $0xe8] sm:$0xff]
        %v894 = vld [vmem:[#allocation3 + $0xf0] sm:$0xff]
        %v895 = vld [vmem:[#allocation3 + $0xf8] sm:$0xff]
        %v928 = vunpack.c.l.b16 %v864
        %v929 = vunpack.c.h.b16 %v864
        %v930 = vunpack.c.l.b16 %v865
        %v931 = vunpack.c.h.b16 %v865
        %v932 = vunpack.c.l.b16 %v866
        %v933 = vunpack.c.h.b16 %v866
        %v934 = vunpack.c.l.b16 %v867
        %v935 = vunpack.c.h.b16 %v867
        %v936 = vunpack.c.l.b16 %v868
        %v937 = vunpack.c.h.b16 %v868
        %v938 = vunpack.c.l.b16 %v869
        %v939 = vunpack.c.h.b16 %v869
        %v940 = vunpack.c.l.b16 %v870
        %v941 = vunpack.c.h.b16 %v870
        %v942 = vunpack.c.l.b16 %v871
        %v943 = vunpack.c.h.b16 %v871
        %v944 = vunpack.c.l.b16 %v872
        %v945 = vunpack.c.h.b16 %v872
        %v946 = vunpack.c.l.b16 %v873
        %v947 = vunpack.c.h.b16 %v873
        %v948 = vunpack.c.l.b16 %v874
        %v949 = vunpack.c.h.b16 %v874
        %v950 = vunpack.c.l.b16 %v875
        %v951 = vunpack.c.h.b16 %v875
        %v952 = vunpack.c.l.b16 %v876
        %v953 = vunpack.c.h.b16 %v876
        %v954 = vunpack.c.l.b16 %v877
        %v955 = vunpack.c.h.b16 %v877
        %v956 = vunpack.c.l.b16 %v878
        %v957 = vunpack.c.h.b16 %v878
        %v958 = vunpack.c.l.b16 %v879
        %v959 = vunpack.c.h.b16 %v879
        %v960 = vunpack.c.l.b16 %v880
        %v961 = vunpack.c.h.b16 %v880
        %v962 = vunpack.c.l.b16 %v881
        %v963 = vunpack.c.h.b16 %v881
        %v964 = vunpack.c.l.b16 %v882
        %v965 = vunpack.c.h.b16 %v882
        %v966 = vunpack.c.l.b16 %v883
        %v967 = vunpack.c.h.b16 %v883
        %v968 = vunpack.c.l.b16 %v884
        %v969 = vunpack.c.h.b16 %v884
        %v970 = vunpack.c.l.b16 %v885
        %v971 = vunpack.c.h.b16 %v885
        %v972 = vunpack.c.l.b16 %v886
        %v973 = vunpack.c.h.b16 %v886
        %v974 = vunpack.c.l.b16 %v887
        %v975 = vunpack.c.h.b16 %v887
        %v976 = vunpack.c.l.b16 %v888
        %v977 = vunpack.c.h.b16 %v888
        %v978 = vunpack.c.l.b16 %v889
        %v979 = vunpack.c.h.b16 %v889
        %v980 = vunpack.c.l.b16 %v890
        %v981 = vunpack.c.h.b16 %v890
        %v982 = vunpack.c.l.b16 %v891
        %v983 = vunpack.c.h.b16 %v891
        %v984 = vunpack.c.l.b16 %v892
        %v985 = vunpack.c.h.b16 %v892
        %v986 = vunpack.c.l.b16 %v893
        %v987 = vunpack.c.h.b16 %v893
        %v988 = vunpack.c.l.b16 %v894
        %v989 = vunpack.c.h.b16 %v894
        %v990 = vunpack.c.l.b16 %v895
        %v991 = vunpack.c.h.b16 %v895
        %v992 = vpack.c.b16 %v932, %v928
        %v993 = vpack.c.b16 %v933, %v929
        %v994 = vpack.c.b16 %v934, %v930
        %v995 = vpack.c.b16 %v935, %v931
        %v996 = vpack.c.b16 %v940, %v936
        %v997 = vpack.c.b16 %v941, %v937
        %v998 = vpack.c.b16 %v942, %v938
        %v999 = vpack.c.b16 %v943, %v939
        %v1000 = vpack.c.b16 %v948, %v944
        %v1001 = vpack.c.b16 %v949, %v945
        %v1002 = vpack.c.b16 %v950, %v946
        %v1003 = vpack.c.b16 %v951, %v947
        %v1004 = vpack.c.b16 %v956, %v952
        %v1005 = vpack.c.b16 %v957, %v953
        %v1006 = vpack.c.b16 %v958, %v954
        %v1007 = vpack.c.b16 %v959, %v955
        %v1008 = vpack.c.b16 %v964, %v960
        %v1009 = vpack.c.b16 %v965, %v961
        %v1010 = vpack.c.b16 %v966, %v962
        %v1011 = vpack.c.b16 %v967, %v963
        %v1012 = vpack.c.b16 %v972, %v968
        %v1013 = vpack.c.b16 %v973, %v969
        %v1014 = vpack.c.b16 %v974, %v970
        %v1015 = vpack.c.b16 %v975, %v971
        %v1016 = vpack.c.b16 %v980, %v976
        %v1017 = vpack.c.b16 %v981, %v977
        %v1018 = vpack.c.b16 %v982, %v978
        %v1019 = vpack.c.b16 %v983, %v979
        %v1020 = vpack.c.b16 %v988, %v984
        %v1021 = vpack.c.b16 %v989, %v985
        %v1022 = vpack.c.b16 %v990, %v986
        %v1023 = vpack.c.b16 %v991, %v987
        %1056 = vmatprep.subr.bf16.mxu0 %v993
        %1057 = vmatpush1.bf16.msra.mxu0 %v992
        %1058 = vmatprep.subr.bf16.mxu0 %v997
        %1059 = vmatpush1.bf16.msra.mxu0 %v996
        %1060 = vmatprep.subr.bf16.mxu0 %v1001
        %1061 = vmatpush1.bf16.msra.mxu0 %v1000
        %1062 = vmatprep.subr.bf16.mxu0 %v1005
        %1063 = vmatpush1.bf16.msra.mxu0 %v1004
        %1064 = vmatprep.subr.bf16.mxu0 %v1009
        %1065 = vmatpush1.bf16.msra.mxu0 %v1008
        %1066 = vmatprep.subr.bf16.mxu0 %v1013
        %1067 = vmatpush1.bf16.msra.mxu0 %v1012
        %1068 = vmatprep.subr.bf16.mxu0 %v1017
        %1069 = vmatpush1.bf16.msra.mxu0 %v1016
        %1070 = vmatprep.subr.bf16.mxu0 %v1021
        %1071 = vmatpush1.bf16.msra.mxu0 %v1020
        %1072 = vmatprep.subr.bf16.mxu0 0
        %1073 = vmatpush1.bf16.msra.mxu0 0
        %1074 = vmatprep.subr.bf16.mxu0 0
        %1075 = vmatpush1.bf16.msra.mxu0 0
        %1076 = vmatprep.subr.bf16.mxu0 0
        %1077 = vmatpush1.bf16.msra.mxu0 0
        %1078 = vmatprep.subr.bf16.mxu0 0
        %1079 = vmatpush1.bf16.msra.mxu0 0
        %1080 = vmatprep.subr.bf16.mxu0 0
        %1081 = vmatpush1.bf16.msra.mxu0 0
        %1082 = vmatprep.subr.bf16.mxu0 0
        %1083 = vmatpush1.bf16.msra.mxu0 0
        %1084 = vmatprep.subr.bf16.mxu0 0
        %1085 = vmatpush1.bf16.msra.mxu0 0
        %1086 = vmatprep.subr.bf16.mxu0 0
        %1087 = vmatpush1.bf16.msra.mxu0 0
        %1088 = vmatprep.mubr.bf16.mxu0 0
        %1089 = vmatmul.mubr.bf16.gmra.mrb[0].mxu0 %v860
        %v1090 = vpop.f32.mrb[0].mxu0
        %v1091 = vadd.f32 0.0, %v1090
        %v1092 = vpop.f32.mrb[0].mxu0
        %v1093 = vadd.f32 0.0, %v1092
        %v1094 = vpop.f32.mrb[0].mxu0
        %v1095 = vadd.f32 0.0, %v1094
        %v1096 = vpop.f32.mrb[0].mxu0
        %v1097 = vadd.f32 0.0, %v1096
        %1098 = vmatprep.mubr.bf16.mxu0 0
        %1099 = vmatmul.mubr.bf16.gmra.mrb[0].mxu0 %v862
        %v1100 = vpop.f32.mrb[0].mxu0
        %v1101 = vadd.f32 0.0, %v1100
        %v1102 = vpop.f32.mrb[0].mxu0
        %v1103 = vadd.f32 0.0, %v1102
        %v1104 = vpop.f32.mrb[0].mxu0
        %v1105 = vadd.f32 0.0, %v1104
        %v1106 = vpop.f32.mrb[0].mxu0
        %v1107 = vadd.f32 0.0, %v1106
        %1108 = vdwg.mxu0
        %1109 = vmatprep.subr.bf16.mxu0 %v995
        %1110 = vmatpush1.bf16.msra.mxu0 %v994
        %1111 = vmatprep.subr.bf16.mxu0 %v999
        %1112 = vmatpush1.bf16.msra.mxu0 %v998
        %1113 = vmatprep.subr.bf16.mxu0 %v1003
        %1114 = vmatpush1.bf16.msra.mxu0 %v1002
        %1115 = vmatprep.subr.bf16.mxu0 %v1007
        %1116 = vmatpush1.bf16.msra.mxu0 %v1006
        %1117 = vmatprep.subr.bf16.mxu0 %v1011
        %1118 = vmatpush1.bf16.msra.mxu0 %v1010
        %1119 = vmatprep.subr.bf16.mxu0 %v1015
        %1120 = vmatpush1.bf16.msra.mxu0 %v1014
        %1121 = vmatprep.subr.bf16.mxu0 %v1019
        %1122 = vmatpush1.bf16.msra.mxu0 %v1018
        %1123 = vmatprep.subr.bf16.mxu0 %v1023
        %1124 = vmatpush1.bf16.msra.mxu0 %v1022
        %1125 = vmatprep.subr.bf16.mxu0 0
        %1126 = vmatpush1.bf16.msra.mxu0 0
        %1127 = vmatprep.subr.bf16.mxu0 0
        %1128 = vmatpush1.bf16.msra.mxu0 0
        %1129 = vmatprep.subr.bf16.mxu0 0
        %1130 = vmatpush1.bf16.msra.mxu0 0
        %1131 = vmatprep.subr.bf16.mxu0 0
        %1132 = vmatpush1.bf16.msra.mxu0 0
        %1133 = vmatprep.subr.bf16.mxu0 0
        %1134 = vmatpush1.bf16.msra.mxu0 0
        %1135 = vmatprep.subr.bf16.mxu0 0
        %1136 = vmatpush1.bf16.msra.mxu0 0
        %1137 = vmatprep.subr.bf16.mxu0 0
        %1138 = vmatpush1.bf16.msra.mxu0 0
        %1139 = vmatprep.subr.bf16.mxu0 0
        %1140 = vmatpush1.bf16.msra.mxu0 0
        %1141 = vmatprep.mubr.bf16.mxu0 0
        %1142 = vmatmul.mubr.bf16.gmra.mrb[0].mxu0 %v860
        %v1143 = vpop.f32.mrb[0].mxu0
        %v1144 = vadd.f32 0.0, %v1143
        %v1145 = vpop.f32.mrb[0].mxu0
        %v1146 = vadd.f32 0.0, %v1145
        %v1147 = vpop.f32.mrb[0].mxu0
        %v1148 = vadd.f32 0.0, %v1147
        %v1149 = vpop.f32.mrb[0].mxu0
        %v1150 = vadd.f32 0.0, %v1149
        %1151 = vmatprep.mubr.bf16.mxu0 0
        %1152 = vmatmul.mubr.bf16.gmra.mrb[0].mxu0 %v862
        %v1153 = vpop.f32.mrb[0].mxu0
        %v1154 = vadd.f32 0.0, %v1153
        %v1155 = vpop.f32.mrb[0].mxu0
        %v1156 = vadd.f32 0.0, %v1155
        %v1157 = vpop.f32.mrb[0].mxu0
        %v1158 = vadd.f32 0.0, %v1157
        %v1159 = vpop.f32.mrb[0].mxu0
        %v1160 = vadd.f32 0.0, %v1159
        %1161 = vdwg.mxu0
        %v1162 = vmax.f32 %v1091, 0.0
        %v1163 = vmax.f32 %v1093, 0.0
        %v1164 = vmax.f32 %v1144, 0.0
        %v1165 = vmax.f32 %v1146, 0.0
        %v1166 = vmax.f32 %v1095, 0.0
        %v1167 = vmax.f32 %v1097, 0.0
        %v1168 = vmax.f32 %v1148, 0.0
        %v1169 = vmax.f32 %v1150, 0.0
        %v1170 = vmax.f32 %v1101, 0.0
        %v1171 = vmax.f32 %v1103, 0.0
        %v1172 = vmax.f32 %v1154, 0.0
        %v1173 = vmax.f32 %v1156, 0.0
        %v1174 = vmax.f32 %v1105, 0.0
        %v1175 = vmax.f32 %v1107, 0.0
        %v1176 = vmax.f32 %v1158, 0.0
        %v1177 = vmax.f32 %v1160, 0.0
        %v1178 = vld [vmem:[#allocation5] sm:$0xff]
        %v1179 = vld [vmem:[#allocation5 + $0x8] sm:$0xff]
        %v1180 = vld [vmem:[#allocation5 + $0x10] sm:$0xff]
        %v1181 = vld [vmem:[#allocation5 + $0x18] sm:$0xff]
        %v1182 = vld [vmem:[#allocation5 + $0x20] sm:$0xff]
        %v1183 = vld [vmem:[#allocation5 + $0x28] sm:$0xff]
        %v1184 = vld [vmem:[#allocation5 + $0x30] sm:$0xff]
        %v1185 = vld [vmem:[#allocation5 + $0x38] sm:$0xff]
        %v1186 = vld [vmem:[#allocation5 + $0x40] sm:$0xff]
        %v1187 = vld [vmem:[#allocation5 + $0x48] sm:$0xff]
        %v1188 = vld [vmem:[#allocation5 + $0x50] sm:$0xff]
        %v1189 = vld [vmem:[#allocation5 + $0x58] sm:$0xff]
        %v1190 = vld [vmem:[#allocation5 + $0x60] sm:$0xff]
        %v1191 = vld [vmem:[#allocation5 + $0x68] sm:$0xff]
        %v1192 = vld [vmem:[#allocation5 + $0x70] sm:$0xff]
        %v1193 = vld [vmem:[#allocation5 + $0x78] sm:$0xff]
        %v1194 = vld [vmem:[#allocation5 + $0x80] sm:$0xff]
        %v1195 = vld [vmem:[#allocation5 + $0x88] sm:$0xff]
        %v1196 = vld [vmem:[#allocation5 + $0x90] sm:$0xff]
        %v1197 = vld [vmem:[#allocation5 + $0x98] sm:$0xff]
        %v1198 = vld [vmem:[#allocation5 + $0xa0] sm:$0xff]
        %v1199 = vld [vmem:[#allocation5 + $0xa8] sm:$0xff]
        %v1200 = vld [vmem:[#allocation5 + $0xb0] sm:$0xff]
        %v1201 = vld [vmem:[#allocation5 + $0xb8] sm:$0xff]
        %v1202 = vld [vmem:[#allocation5 + $0xc0] sm:$0xff]
        %v1203 = vld [vmem:[#allocation5 + $0xc8] sm:$0xff]
        %v1204 = vld [vmem:[#allocation5 + $0xd0] sm:$0xff]
        %v1205 = vld [vmem:[#allocation5 + $0xd8] sm:$0xff]
        %v1206 = vld [vmem:[#allocation5 + $0xe0] sm:$0xff]
        %v1207 = vld [vmem:[#allocation5 + $0xe8] sm:$0xff]
        %v1208 = vld [vmem:[#allocation5 + $0xf0] sm:$0xff]
        %v1209 = vld [vmem:[#allocation5 + $0xf8] sm:$0xff]
        %v1242 = vunpack.c.l.b16 %v1178
        %v1243 = vunpack.c.h.b16 %v1178
        %v1244 = vunpack.c.l.b16 %v1179
        %v1245 = vunpack.c.h.b16 %v1179
        %v1246 = vunpack.c.l.b16 %v1180
        %v1247 = vunpack.c.h.b16 %v1180
        %v1248 = vunpack.c.l.b16 %v1181
        %v1249 = vunpack.c.h.b16 %v1181
        %v1250 = vunpack.c.l.b16 %v1182
        %v1251 = vunpack.c.h.b16 %v1182
        %v1252 = vunpack.c.l.b16 %v1183
        %v1253 = vunpack.c.h.b16 %v1183
        %v1254 = vunpack.c.l.b16 %v1184
        %v1255 = vunpack.c.h.b16 %v1184
        %v1256 = vunpack.c.l.b16 %v1185
        %v1257 = vunpack.c.h.b16 %v1185
        %v1258 = vunpack.c.l.b16 %v1186
        %v1259 = vunpack.c.h.b16 %v1186
        %v1260 = vunpack.c.l.b16 %v1187
        %v1261 = vunpack.c.h.b16 %v1187
        %v1262 = vunpack.c.l.b16 %v1188
        %v1263 = vunpack.c.h.b16 %v1188
        %v1264 = vunpack.c.l.b16 %v1189
        %v1265 = vunpack.c.h.b16 %v1189
        %v1266 = vunpack.c.l.b16 %v1190
        %v1267 = vunpack.c.h.b16 %v1190
        %v1268 = vunpack.c.l.b16 %v1191
        %v1269 = vunpack.c.h.b16 %v1191
        %v1270 = vunpack.c.l.b16 %v1192
        %v1271 = vunpack.c.h.b16 %v1192
        %v1272 = vunpack.c.l.b16 %v1193
        %v1273 = vunpack.c.h.b16 %v1193
        %v1274 = vunpack.c.l.b16 %v1194
        %v1275 = vunpack.c.h.b16 %v1194
        %v1276 = vunpack.c.l.b16 %v1195
        %v1277 = vunpack.c.h.b16 %v1195
        %v1278 = vunpack.c.l.b16 %v1196
        %v1279 = vunpack.c.h.b16 %v1196
        %v1280 = vunpack.c.l.b16 %v1197
        %v1281 = vunpack.c.h.b16 %v1197
        %v1282 = vunpack.c.l.b16 %v1198
        %v1283 = vunpack.c.h.b16 %v1198
        %v1284 = vunpack.c.l.b16 %v1199
        %v1285 = vunpack.c.h.b16 %v1199
        %v1286 = vunpack.c.l.b16 %v1200
        %v1287 = vunpack.c.h.b16 %v1200
        %v1288 = vunpack.c.l.b16 %v1201
        %v1289 = vunpack.c.h.b16 %v1201
        %v1290 = vunpack.c.l.b16 %v1202
        %v1291 = vunpack.c.h.b16 %v1202
        %v1292 = vunpack.c.l.b16 %v1203
        %v1293 = vunpack.c.h.b16 %v1203
        %v1294 = vunpack.c.l.b16 %v1204
        %v1295 = vunpack.c.h.b16 %v1204
        %v1296 = vunpack.c.l.b16 %v1205
        %v1297 = vunpack.c.h.b16 %v1205
        %v1298 = vunpack.c.l.b16 %v1206
        %v1299 = vunpack.c.h.b16 %v1206
        %v1300 = vunpack.c.l.b16 %v1207
        %v1301 = vunpack.c.h.b16 %v1207
        %v1302 = vunpack.c.l.b16 %v1208
        %v1303 = vunpack.c.h.b16 %v1208
        %v1304 = vunpack.c.l.b16 %v1209
        %v1305 = vunpack.c.h.b16 %v1209
        %v1306 = vpack.c.b16 %v1246, %v1242
        %v1307 = vpack.c.b16 %v1247, %v1243
        %v1308 = vpack.c.b16 %v1248, %v1244
        %v1309 = vpack.c.b16 %v1249, %v1245
        %v1310 = vpack.c.b16 %v1254, %v1250
        %v1311 = vpack.c.b16 %v1255, %v1251
        %v1312 = vpack.c.b16 %v1256, %v1252
        %v1313 = vpack.c.b16 %v1257, %v1253
        %v1314 = vpack.c.b16 %v1262, %v1258
        %v1315 = vpack.c.b16 %v1263, %v1259
        %v1316 = vpack.c.b16 %v1264, %v1260
        %v1317 = vpack.c.b16 %v1265, %v1261
        %v1318 = vpack.c.b16 %v1270, %v1266
        %v1319 = vpack.c.b16 %v1271, %v1267
        %v1320 = vpack.c.b16 %v1272, %v1268
        %v1321 = vpack.c.b16 %v1273, %v1269
        %v1322 = vpack.c.b16 %v1278, %v1274
        %v1323 = vpack.c.b16 %v1279, %v1275
        %v1324 = vpack.c.b16 %v1280, %v1276
        %v1325 = vpack.c.b16 %v1281, %v1277
        %v1326 = vpack.c.b16 %v1286, %v1282
        %v1327 = vpack.c.b16 %v1287, %v1283
        %v1328 = vpack.c.b16 %v1288, %v1284
        %v1329 = vpack.c.b16 %v1289, %v1285
        %v1330 = vpack.c.b16 %v1294, %v1290
        %v1331 = vpack.c.b16 %v1295, %v1291
        %v1332 = vpack.c.b16 %v1296, %v1292
        %v1333 = vpack.c.b16 %v1297, %v1293
        %v1334 = vpack.c.b16 %v1302, %v1298
        %v1335 = vpack.c.b16 %v1303, %v1299
        %v1336 = vpack.c.b16 %v1304, %v1300
        %v1337 = vpack.c.b16 %v1305, %v1301
        %1370 = vmatprep.subr.bf16.mxu0 %v1307
        %1371 = vmatpush1.bf16.msra.mxu0 %v1306
        %1372 = vmatprep.subr.bf16.mxu0 %v1311
        %1373 = vmatpush1.bf16.msra.mxu0 %v1310
        %1374 = vmatprep.subr.bf16.mxu0 %v1315
        %1375 = vmatpush1.bf16.msra.mxu0 %v1314
        %1376 = vmatprep.subr.bf16.mxu0 %v1319
        %1377 = vmatpush1.bf16.msra.mxu0 %v1318
        %1378 = vmatprep.subr.bf16.mxu0 %v1323
        %1379 = vmatpush1.bf16.msra.mxu0 %v1322
        %1380 = vmatprep.subr.bf16.mxu0 %v1327
        %1381 = vmatpush1.bf16.msra.mxu0 %v1326
        %1382 = vmatprep.subr.bf16.mxu0 %v1331
        %1383 = vmatpush1.bf16.msra.mxu0 %v1330
        %1384 = vmatprep.subr.bf16.mxu0 %v1335
        %1385 = vmatpush1.bf16.msra.mxu0 %v1334
        %1386 = vmatprep.subr.bf16.mxu0 0
        %1387 = vmatpush1.bf16.msra.mxu0 0
        %1388 = vmatprep.subr.bf16.mxu0 0
        %1389 = vmatpush1.bf16.msra.mxu0 0
        %1390 = vmatprep.subr.bf16.mxu0 0
        %1391 = vmatpush1.bf16.msra.mxu0 0
        %1392 = vmatprep.subr.bf16.mxu0 0
        %1393 = vmatpush1.bf16.msra.mxu0 0
        %1394 = vmatprep.subr.bf16.mxu0 0
        %1395 = vmatpush1.bf16.msra.mxu0 0
        %1396 = vmatprep.subr.bf16.mxu0 0
        %1397 = vmatpush1.bf16.msra.mxu0 0
        %1398 = vmatprep.subr.bf16.mxu0 0
        %1399 = vmatpush1.bf16.msra.mxu0 0
        %1400 = vmatprep.subr.bf16.mxu0 0
        %1401 = vmatpush1.bf16.msra.mxu0 0
        %1402 = vmatprep.mubr.bf16.mxu0 0
        %1403 = vmatmul.mubr.bf16.gmra.mrb[0].mxu0 %v861
        %v1404 = vpop.f32.mrb[0].mxu0
        %v1405 = vadd.f32 0.0, %v1404
        %v1406 = vpop.f32.mrb[0].mxu0
        %v1407 = vadd.f32 0.0, %v1406
        %v1408 = vpop.f32.mrb[0].mxu0
        %v1409 = vadd.f32 0.0, %v1408
        %v1410 = vpop.f32.mrb[0].mxu0
        %v1411 = vadd.f32 0.0, %v1410
        %1412 = vmatprep.mubr.bf16.mxu0 0
        %1413 = vmatmul.mubr.bf16.gmra.mrb[0].mxu0 %v863
        %v1414 = vpop.f32.mrb[0].mxu0
        %v1415 = vadd.f32 0.0, %v1414
        %v1416 = vpop.f32.mrb[0].mxu0
        %v1417 = vadd.f32 0.0, %v1416
        %v1418 = vpop.f32.mrb[0].mxu0
        %v1419 = vadd.f32 0.0, %v1418
        %v1420 = vpop.f32.mrb[0].mxu0
        %v1421 = vadd.f32 0.0, %v1420
        %1422 = vdwg.mxu0
        %1423 = vmatprep.subr.bf16.mxu0 %v1309
        %1424 = vmatpush1.bf16.msra.mxu0 %v1308
        %1425 = vmatprep.subr.bf16.mxu0 %v1313
        %1426 = vmatpush1.bf16.msra.mxu0 %v1312
        %1427 = vmatprep.subr.bf16.mxu0 %v1317
        %1428 = vmatpush1.bf16.msra.mxu0 %v1316
        %1429 = vmatprep.subr.bf16.mxu0 %v1321
        %1430 = vmatpush1.bf16.msra.mxu0 %v1320
        %1431 = vmatprep.subr.bf16.mxu0 %v1325
        %1432 = vmatpush1.bf16.msra.mxu0 %v1324
        %1433 = vmatprep.subr.bf16.mxu0 %v1329
        %1434 = vmatpush1.bf16.msra.mxu0 %v1328
        %1435 = vmatprep.subr.bf16.mxu0 %v1333
        %1436 = vmatpush1.bf16.msra.mxu0 %v1332
        %1437 = vmatprep.subr.bf16.mxu0 %v1337
        %1438 = vmatpush1.bf16.msra.mxu0 %v1336
        %1439 = vmatprep.subr.bf16.mxu0 0
        %1440 = vmatpush1.bf16.msra.mxu0 0
        %1441 = vmatprep.subr.bf16.mxu0 0
        %1442 = vmatpush1.bf16.msra.mxu0 0
        %1443 = vmatprep.subr.bf16.mxu0 0
        %1444 = vmatpush1.bf16.msra.mxu0 0
        %1445 = vmatprep.subr.bf16.mxu0 0
        %1446 = vmatpush1.bf16.msra.mxu0 0
        %1447 = vmatprep.subr.bf16.mxu0 0
        %1448 = vmatpush1.bf16.msra.mxu0 0
        %1449 = vmatprep.subr.bf16.mxu0 0
        %1450 = vmatpush1.bf16.msra.mxu0 0
        %1451 = vmatprep.subr.bf16.mxu0 0
        %1452 = vmatpush1.bf16.msra.mxu0 0
        %1453 = vmatprep.subr.bf16.mxu0 0
        %1454 = vmatpush1.bf16.msra.mxu0 0
        %1455 = vmatprep.mubr.bf16.mxu0 0
        %1456 = vmatmul.mubr.bf16.gmra.mrb[0].mxu0 %v861
        %v1457 = vpop.f32.mrb[0].mxu0
        %v1458 = vadd.f32 0.0, %v1457
        %v1459 = vpop.f32.mrb[0].mxu0
        %v1460 = vadd.f32 0.0, %v1459
        %v1461 = vpop.f32.mrb[0].mxu0
        %v1462 = vadd.f32 0.0, %v1461
        %v1463 = vpop.f32.mrb[0].mxu0
        %v1464 = vadd.f32 0.0, %v1463
        %1465 = vmatprep.mubr.bf16.mxu0 0
        %1466 = vmatmul.mubr.bf16.gmra.mrb[0].mxu0 %v863
        %v1467 = vpop.f32.mrb[0].mxu0
        %v1468 = vadd.f32 0.0, %v1467
        %v1469 = vpop.f32.mrb[0].mxu0
        %v1470 = vadd.f32 0.0, %v1469
        %v1471 = vpop.f32.mrb[0].mxu0
        %v1472 = vadd.f32 0.0, %v1471
        %v1473 = vpop.f32.mrb[0].mxu0
        %v1474 = vadd.f32 0.0, %v1473
        %1475 = vdwg.mxu0
        %v1476 = vmax.f32 %v1405, 0.0
        %v1477 = vmax.f32 %v1407, 0.0
        %v1478 = vmax.f32 %v1458, 0.0
        %v1479 = vmax.f32 %v1460, 0.0
        %v1480 = vmax.f32 %v1409, 0.0
        %v1481 = vmax.f32 %v1411, 0.0
        %v1482 = vmax.f32 %v1462, 0.0
        %v1483 = vmax.f32 %v1464, 0.0
        %v1484 = vmax.f32 %v1415, 0.0
        %v1485 = vmax.f32 %v1417, 0.0
        %v1486 = vmax.f32 %v1468, 0.0
        %v1487 = vmax.f32 %v1470, 0.0
        %v1488 = vmax.f32 %v1419, 0.0
        %v1489 = vmax.f32 %v1421, 0.0
        %v1490 = vmax.f32 %v1472, 0.0
        %v1491 = vmax.f32 %v1474, 0.0
        %v1492 = vmul.f32 %v1162, %v1162
        %v1493 = vmul.f32 %v1166, %v1166
        %v1494 = vmul.f32 %v1170, %v1170
        %v1495 = vmul.f32 %v1174, %v1174
        %v1496 = vmul.f32 %v1163, %v1163
        %v1497 = vmul.f32 %v1167, %v1167
        %v1498 = vmul.f32 %v1171, %v1171
        %v1499 = vmul.f32 %v1175, %v1175
        %v1500 = vmul.f32 %v1164, %v1164
        %v1501 = vmul.f32 %v1168, %v1168
        %v1502 = vmul.f32 %v1172, %v1172
        %v1503 = vmul.f32 %v1176, %v1176
        %v1504 = vmul.f32 %v1165, %v1165
        %v1505 = vmul.f32 %v1169, %v1169
        %v1506 = vmul.f32 %v1173, %v1173
        %v1507 = vmul.f32 %v1177, %v1177
        %v1508 = vadd.f32 %v1492, %v1496
        %v1509 = vadd.f32 %v1493, %v1497
        %v1510 = vadd.f32 %v1494, %v1498
        %v1511 = vadd.f32 %v1495, %v1499
        %v1512 = vadd.f32 %v1508, %v1500
        %v1513 = vadd.f32 %v1509, %v1501
        %v1514 = vadd.f32 %v1510, %v1502
        %v1515 = vadd.f32 %v1511, %v1503
        %v1516 = vadd.f32 %v1512, %v1504
        %v1517 = vadd.f32 %v1513, %v1505
        %v1518 = vadd.f32 %v1514, %v1506
        %v1519 = vadd.f32 %v1515, %v1507
        %v1520 = vadd.f32 %v1516, 1e-10
        %v1521 = vadd.f32 %v1517, 1e-10
        %v1522 = vadd.f32 %v1518, 1e-10
        %v1523 = vadd.f32 %v1519, 1e-10
        %v1524 = vrcp.pop %v1520
        %v1525 = vrcp.pop %v1521
        %v1526 = vrcp.pop %v1522
        %v1527 = vrcp.pop %v1523
        %v1528 = vmul.f32 %v1492, %v1524
        %v1529 = vmul.f32 %v1493, %v1525
        %v1530 = vmul.f32 %v1494, %v1526
        %v1531 = vmul.f32 %v1495, %v1527
        %v1532 = vmul.f32 %v1528, %v709
        %v1533 = vmul.f32 %v1529, %v713
        %v1534 = vmul.f32 %v1530, %v719
        %v1535 = vmul.f32 %v1531, %v723
        %v1536 = vpack.c.bf16 %v1533, %v1532
        %v1537 = vpack.c.bf16 %v1535, %v1534
        %1538 = vst [vmem:[#allocation2] sm:$0xff] %v1536
        %1539 = vst [vmem:[#allocation2 + $0x20] sm:$0xff] %v1537
        %v1540 = vmul.f32 %v1528, %v762
        %v1541 = vmul.f32 %v1529, %v766
        %v1542 = vmul.f32 %v1530, %v772
        %v1543 = vmul.f32 %v1531, %v776
        %v1544 = vpack.c.bf16 %v1541, %v1540
        %v1545 = vpack.c.bf16 %v1543, %v1542
        %1546 = vst [vmem:[#allocation2 + $0x10] sm:$0xff] %v1544
        %1547 = vst [vmem:[#allocation2 + $0x30] sm:$0xff] %v1545
        %v1548 = vmul.f32 %v1496, %v1524
        %v1549 = vmul.f32 %v1497, %v1525
        %v1550 = vmul.f32 %v1498, %v1526
        %v1551 = vmul.f32 %v1499, %v1527
        %v1552 = vmul.f32 %v1548, %v709
        %v1553 = vmul.f32 %v1549, %v713
        %v1554 = vmul.f32 %v1550, %v719
        %v1555 = vmul.f32 %v1551, %v723
        %v1556 = vpack.c.bf16 %v1553, %v1552
        %v1557 = vpack.c.bf16 %v1555, %v1554
        %1558 = vst [vmem:[#allocation2 + $0x40] sm:$0xff] %v1556
        %1559 = vst [vmem:[#allocation2 + $0x60] sm:$0xff] %v1557
        %v1560 = vmul.f32 %v1548, %v762
        %v1561 = vmul.f32 %v1549, %v766
        %v1562 = vmul.f32 %v1550, %v772
        %v1563 = vmul.f32 %v1551, %v776
        %v1564 = vpack.c.bf16 %v1561, %v1560
        %v1565 = vpack.c.bf16 %v1563, %v1562
        %1566 = vst [vmem:[#allocation2 + $0x50] sm:$0xff] %v1564
        %1567 = vst [vmem:[#allocation2 + $0x70] sm:$0xff] %v1565
        %v1568 = vmul.f32 %v1500, %v1524
        %v1569 = vmul.f32 %v1501, %v1525
        %v1570 = vmul.f32 %v1502, %v1526
        %v1571 = vmul.f32 %v1503, %v1527
        %v1572 = vmul.f32 %v1568, %v709
        %v1573 = vmul.f32 %v1569, %v713
        %v1574 = vmul.f32 %v1570, %v719
        %v1575 = vmul.f32 %v1571, %v723
        %v1576 = vpack.c.bf16 %v1573, %v1572
        %v1577 = vpack.c.bf16 %v1575, %v1574
        %1578 = vst [vmem:[#allocation2 + $0x80] sm:$0xff] %v1576
        %1579 = vst [vmem:[#allocation2 + $0xa0] sm:$0xff] %v1577
        %v1580 = vmul.f32 %v1568, %v762
        %v1581 = vmul.f32 %v1569, %v766
        %v1582 = vmul.f32 %v1570, %v772
        %v1583 = vmul.f32 %v1571, %v776
        %v1584 = vpack.c.bf16 %v1581, %v1580
        %v1585 = vpack.c.bf16 %v1583, %v1582
        %1586 = vst [vmem:[#allocation2 + $0x90] sm:$0xff] %v1584
        %1587 = vst [vmem:[#allocation2 + $0xb0] sm:$0xff] %v1585
        %v1588 = vmul.f32 %v1504, %v1524
        %v1589 = vmul.f32 %v1505, %v1525
        %v1590 = vmul.f32 %v1506, %v1526
        %v1591 = vmul.f32 %v1507, %v1527
        %v1592 = vmul.f32 %v1588, %v709
        %v1593 = vmul.f32 %v1589, %v713
        %v1594 = vmul.f32 %v1590, %v719
        %v1595 = vmul.f32 %v1591, %v723
        %v1596 = vpack.c.bf16 %v1593, %v1592
        %v1597 = vpack.c.bf16 %v1595, %v1594
        %1598 = vst [vmem:[#allocation2 + $0xc0] sm:$0xff] %v1596
        %1599 = vst [vmem:[#allocation2 + $0xe0] sm:$0xff] %v1597
        %v1600 = vmul.f32 %v1588, %v762
        %v1601 = vmul.f32 %v1589, %v766
        %v1602 = vmul.f32 %v1590, %v772
        %v1603 = vmul.f32 %v1591, %v776
        %v1604 = vpack.c.bf16 %v1601, %v1600
        %v1605 = vpack.c.bf16 %v1603, %v1602
        %1606 = vst [vmem:[#allocation2 + $0xd0] sm:$0xff] %v1604
        %1607 = vst [vmem:[#allocation2 + $0xf0] sm:$0xff] %v1605
        %v1608 = vmul.f32 %v1476, %v1476
        %v1609 = vmul.f32 %v1480, %v1480
        %v1610 = vmul.f32 %v1484, %v1484
        %v1611 = vmul.f32 %v1488, %v1488
        %v1612 = vmul.f32 %v1477, %v1477
        %v1613 = vmul.f32 %v1481, %v1481
        %v1614 = vmul.f32 %v1485, %v1485
        %v1615 = vmul.f32 %v1489, %v1489
        %v1616 = vmul.f32 %v1478, %v1478
        %v1617 = vmul.f32 %v1482, %v1482
        %v1618 = vmul.f32 %v1486, %v1486
        %v1619 = vmul.f32 %v1490, %v1490
        %v1620 = vmul.f32 %v1479, %v1479
        %v1621 = vmul.f32 %v1483, %v1483
        %v1622 = vmul.f32 %v1487, %v1487
        %v1623 = vmul.f32 %v1491, %v1491
        %v1624 = vadd.f32 %v1608, %v1612
        %v1625 = vadd.f32 %v1609, %v1613
        %v1626 = vadd.f32 %v1610, %v1614
        %v1627 = vadd.f32 %v1611, %v1615
        %v1628 = vadd.f32 %v1624, %v1616
        %v1629 = vadd.f32 %v1625, %v1617
        %v1630 = vadd.f32 %v1626, %v1618
        %v1631 = vadd.f32 %v1627, %v1619
        %v1632 = vadd.f32 %v1628, %v1620
        %v1633 = vadd.f32 %v1629, %v1621
        %v1634 = vadd.f32 %v1630, %v1622
        %v1635 = vadd.f32 %v1631, %v1623
        %v1636 = vadd.f32 %v1632, 1e-10
        %v1637 = vadd.f32 %v1633, 1e-10
        %v1638 = vadd.f32 %v1634, 1e-10
        %v1639 = vadd.f32 %v1635, 1e-10
        %v1640 = vrcp.pop %v1636
        %v1641 = vrcp.pop %v1637
        %v1642 = vrcp.pop %v1638
        %v1643 = vrcp.pop %v1639
        %v1644 = vmul.f32 %v1608, %v1640
        %v1645 = vmul.f32 %v1609, %v1641
        %v1646 = vmul.f32 %v1610, %v1642
        %v1647 = vmul.f32 %v1611, %v1643
        %v1648 = vmul.f32 %v1644, %v711
        %v1649 = vmul.f32 %v1645, %v715
        %v1650 = vmul.f32 %v1646, %v721
        %v1651 = vmul.f32 %v1647, %v725
        %v1652 = vpack.c.bf16 %v1649, %v1648
        %v1653 = vpack.c.bf16 %v1651, %v1650
        %1654 = vst [vmem:[#allocation2 + $0x8] sm:$0xff] %v1652
        %1655 = vst [vmem:[#allocation2 + $0x28] sm:$0xff] %v1653
        %v1656 = vmul.f32 %v1644, %v764
        %v1657 = vmul.f32 %v1645, %v768
        %v1658 = vmul.f32 %v1646, %v774
        %v1659 = vmul.f32 %v1647, %v778
        %v1660 = vpack.c.bf16 %v1657, %v1656
        %v1661 = vpack.c.bf16 %v1659, %v1658
        %1662 = vst [vmem:[#allocation2 + $0x18] sm:$0xff] %v1660
        %1663 = vst [vmem:[#allocation2 + $0x38] sm:$0xff] %v1661
        %v1664 = vmul.f32 %v1612, %v1640
        %v1665 = vmul.f32 %v1613, %v1641
        %v1666 = vmul.f32 %v1614, %v1642
        %v1667 = vmul.f32 %v1615, %v1643
        %v1668 = vmul.f32 %v1664, %v711
        %v1669 = vmul.f32 %v1665, %v715
        %v1670 = vmul.f32 %v1666, %v721
        %v1671 = vmul.f32 %v1667, %v725
        %v1672 = vpack.c.bf16 %v1669, %v1668
        %v1673 = vpack.c.bf16 %v1671, %v1670
        %1674 = vst [vmem:[#allocation2 + $0x48] sm:$0xff] %v1672
        %1675 = vst [vmem:[#allocation2 + $0x68] sm:$0xff] %v1673
        %v1676 = vmul.f32 %v1664, %v764
        %v1677 = vmul.f32 %v1665, %v768
        %v1678 = vmul.f32 %v1666, %v774
        %v1679 = vmul.f32 %v1667, %v778
        %v1680 = vpack.c.bf16 %v1677, %v1676
        %v1681 = vpack.c.bf16 %v1679, %v1678
        %1682 = vst [vmem:[#allocation2 + $0x58] sm:$0xff] %v1680
        %1683 = vst [vmem:[#allocation2 + $0x78] sm:$0xff] %v1681
        %v1684 = vmul.f32 %v1616, %v1640
        %v1685 = vmul.f32 %v1617, %v1641
        %v1686 = vmul.f32 %v1618, %v1642
        %v1687 = vmul.f32 %v1619, %v1643
        %v1688 = vmul.f32 %v1684, %v711
        %v1689 = vmul.f32 %v1685, %v715
        %v1690 = vmul.f32 %v1686, %v721
        %v1691 = vmul.f32 %v1687, %v725
        %v1692 = vpack.c.bf16 %v1689, %v1688
        %v1693 = vpack.c.bf16 %v1691, %v1690
        %1694 = vst [vmem:[#allocation2 + $0x88] sm:$0xff] %v1692
        %1695 = vst [vmem:[#allocation2 + $0xa8] sm:$0xff] %v1693
        %v1696 = vmul.f32 %v1684, %v764
        %v1697 = vmul.f32 %v1685, %v768
        %v1698 = vmul.f32 %v1686, %v774
        %v1699 = vmul.f32 %v1687, %v778
        %v1700 = vpack.c.bf16 %v1697, %v1696
        %v1701 = vpack.c.bf16 %v1699, %v1698
        %1702 = vst [vmem:[#allocation2 + $0x98] sm:$0xff] %v1700
        %1703 = vst [vmem:[#allocation2 + $0xb8] sm:$0xff] %v1701
        %v1704 = vmul.f32 %v1620, %v1640
        %v1705 = vmul.f32 %v1621, %v1641
        %v1706 = vmul.f32 %v1622, %v1642
        %v1707 = vmul.f32 %v1623, %v1643
        %v1708 = vmul.f32 %v1704, %v711
        %v1709 = vmul.f32 %v1705, %v715
        %v1710 = vmul.f32 %v1706, %v721
        %v1711 = vmul.f32 %v1707, %v725
        %v1712 = vpack.c.bf16 %v1709, %v1708
        %v1713 = vpack.c.bf16 %v1711, %v1710
        %1714 = vst [vmem:[#allocation2 + $0xc8] sm:$0xff] %v1712
        %1715 = vst [vmem:[#allocation2 + $0xe8] sm:$0xff] %v1713
        %v1716 = vmul.f32 %v1704, %v764
        %v1717 = vmul.f32 %v1705, %v768
        %v1718 = vmul.f32 %v1706, %v774
        %v1719 = vmul.f32 %v1707, %v778
        %v1720 = vpack.c.bf16 %v1717, %v1716
        %v1721 = vpack.c.bf16 %v1719, %v1718
        %1722 = vst [vmem:[#allocation2 + $0xd8] sm:$0xff] %v1720
        %1723 = vst [vmem:[#allocation2 + $0xf8] sm:$0xff] %v1721
        %v1724 = vld [vmem:[#allocation2] sm:$0xff]
        %v1725 = vld [vmem:[#allocation2 + $0x8] sm:$0xff]
        %v1726 = vld [vmem:[#allocation2 + $0x10] sm:$0xff]
        %v1727 = vld [vmem:[#allocation2 + $0x18] sm:$0xff]
        %v1728 = vld [vmem:[#allocation2 + $0x20] sm:$0xff]
        %v1729 = vld [vmem:[#allocation2 + $0x28] sm:$0xff]
        %v1730 = vld [vmem:[#allocation2 + $0x30] sm:$0xff]
        %v1731 = vld [vmem:[#allocation2 + $0x38] sm:$0xff]
        %v1732 = vld [vmem:[#allocation2 + $0x40] sm:$0xff]
        %v1733 = vld [vmem:[#allocation2 + $0x48] sm:$0xff]
        %v1734 = vld [vmem:[#allocation2 + $0x50] sm:$0xff]
        %v1735 = vld [vmem:[#allocation2 + $0x58] sm:$0xff]
        %v1736 = vld [vmem:[#allocation2 + $0x60] sm:$0xff]
        %v1737 = vld [vmem:[#allocation2 + $0x68] sm:$0xff]
        %v1738 = vld [vmem:[#allocation2 + $0x70] sm:$0xff]
        %v1739 = vld [vmem:[#allocation2 + $0x78] sm:$0xff]
        %v1740 = vld [vmem:[#allocation2 + $0x80] sm:$0xff]
        %v1741 = vld [vmem:[#allocation2 + $0x88] sm:$0xff]
        %v1742 = vld [vmem:[#allocation2 + $0x90] sm:$0xff]
        %v1743 = vld [vmem:[#allocation2 + $0x98] sm:$0xff]
        %v1744 = vld [vmem:[#allocation2 + $0xa0] sm:$0xff]
        %v1745 = vld [vmem:[#allocation2 + $0xa8] sm:$0xff]
        %v1746 = vld [vmem:[#allocation2 + $0xb0] sm:$0xff]
        %v1747 = vld [vmem:[#allocation2 + $0xb8] sm:$0xff]
        %v1748 = vld [vmem:[#allocation2 + $0xc0] sm:$0xff]
        %v1749 = vld [vmem:[#allocation2 + $0xc8] sm:$0xff]
        %v1750 = vld [vmem:[#allocation2 + $0xd0] sm:$0xff]
        %v1751 = vld [vmem:[#allocation2 + $0xd8] sm:$0xff]
        %v1752 = vld [vmem:[#allocation2 + $0xe0] sm:$0xff]
        %v1753 = vld [vmem:[#allocation2 + $0xe8] sm:$0xff]
        %v1754 = vld [vmem:[#allocation2 + $0xf0] sm:$0xff]
        %v1755 = vld [vmem:[#allocation2 + $0xf8] sm:$0xff]
        %v1756 = vld [vmem:[#allocation7] sm:$0xff]
        %v1757 = vld [vmem:[#allocation7 + $0x8] sm:$0xff]
        %v1758 = vld [vmem:[#allocation7 + $0x10] sm:$0xff]
        %v1759 = vld [vmem:[#allocation7 + $0x18] sm:$0xff]
        %v1760 = vld [vmem:[#allocation7 + $0x20] sm:$0xff]
        %v1761 = vld [vmem:[#allocation7 + $0x28] sm:$0xff]
        %v1762 = vld [vmem:[#allocation7 + $0x30] sm:$0xff]
        %v1763 = vld [vmem:[#allocation7 + $0x38] sm:$0xff]
        %v1764 = vld [vmem:[#allocation7 + $0x40] sm:$0xff]
        %v1765 = vld [vmem:[#allocation7 + $0x48] sm:$0xff]
        %v1766 = vld [vmem:[#allocation7 + $0x50] sm:$0xff]
        %v1767 = vld [vmem:[#allocation7 + $0x58] sm:$0xff]
        %v1768 = vld [vmem:[#allocation7 + $0x60] sm:$0xff]
        %v1769 = vld [vmem:[#allocation7 + $0x68] sm:$0xff]
        %v1770 = vld [vmem:[#allocation7 + $0x70] sm:$0xff]
        %v1771 = vld [vmem:[#allocation7 + $0x78] sm:$0xff]
        %v1772 = vld [vmem:[#allocation7 + $0x80] sm:$0xff]
        %v1773 = vld [vmem:[#allocation7 + $0x88] sm:$0xff]
        %v1774 = vld [vmem:[#allocation7 + $0x90] sm:$0xff]
        %v1775 = vld [vmem:[#allocation7 + $0x98] sm:$0xff]
        %v1776 = vld [vmem:[#allocation7 + $0xa0] sm:$0xff]
        %v1777 = vld [vmem:[#allocation7 + $0xa8] sm:$0xff]
        %v1778 = vld [vmem:[#allocation7 + $0xb0] sm:$0xff]
        %v1779 = vld [vmem:[#allocation7 + $0xb8] sm:$0xff]
        %v1780 = vld [vmem:[#allocation7 + $0xc0] sm:$0xff]
        %v1781 = vld [vmem:[#allocation7 + $0xc8] sm:$0xff]
        %v1782 = vld [vmem:[#allocation7 + $0xd0] sm:$0xff]
        %v1783 = vld [vmem:[#allocation7 + $0xd8] sm:$0xff]
        %v1784 = vld [vmem:[#allocation7 + $0xe0] sm:$0xff]
        %v1785 = vld [vmem:[#allocation7 + $0xe8] sm:$0xff]
        %v1786 = vld [vmem:[#allocation7 + $0xf0] sm:$0xff]
        %v1787 = vld [vmem:[#allocation7 + $0xf8] sm:$0xff]
        %v1788 = vld [vmem:[#allocation7 + $0x100] sm:$0xff]
        %v1789 = vld [vmem:[#allocation7 + $0x108] sm:$0xff]
        %v1790 = vld [vmem:[#allocation7 + $0x110] sm:$0xff]
        %v1791 = vld [vmem:[#allocation7 + $0x118] sm:$0xff]
        %v1792 = vld [vmem:[#allocation7 + $0x120] sm:$0xff]
        %v1793 = vld [vmem:[#allocation7 + $0x128] sm:$0xff]
        %v1794 = vld [vmem:[#allocation7 + $0x130] sm:$0xff]
        %v1795 = vld [vmem:[#allocation7 + $0x138] sm:$0xff]
        %v1796 = vld [vmem:[#allocation7 + $0x140] sm:$0xff]
        %v1797 = vld [vmem:[#allocation7 + $0x148] sm:$0xff]
        %v1798 = vld [vmem:[#allocation7 + $0x150] sm:$0xff]
        %v1799 = vld [vmem:[#allocation7 + $0x158] sm:$0xff]
        %v1800 = vld [vmem:[#allocation7 + $0x160] sm:$0xff]
        %v1801 = vld [vmem:[#allocation7 + $0x168] sm:$0xff]
        %v1802 = vld [vmem:[#allocation7 + $0x170] sm:$0xff]
        %v1803 = vld [vmem:[#allocation7 + $0x178] sm:$0xff]
        %v1804 = vld [vmem:[#allocation7 + $0x180] sm:$0xff]
        %v1805 = vld [vmem:[#allocation7 + $0x188] sm:$0xff]
        %v1806 = vld [vmem:[#allocation7 + $0x190] sm:$0xff]
        %v1807 = vld [vmem:[#allocation7 + $0x198] sm:$0xff]
        %v1808 = vld [vmem:[#allocation7 + $0x1a0] sm:$0xff]
        %v1809 = vld [vmem:[#allocation7 + $0x1a8] sm:$0xff]
        %v1810 = vld [vmem:[#allocation7 + $0x1b0] sm:$0xff]
        %v1811 = vld [vmem:[#allocation7 + $0x1b8] sm:$0xff]
        %v1812 = vld [vmem:[#allocation7 + $0x1c0] sm:$0xff]
        %v1813 = vld [vmem:[#allocation7 + $0x1c8] sm:$0xff]
        %v1814 = vld [vmem:[#allocation7 + $0x1d0] sm:$0xff]
        %v1815 = vld [vmem:[#allocation7 + $0x1d8] sm:$0xff]
        %v1816 = vld [vmem:[#allocation7 + $0x1e0] sm:$0xff]
        %v1817 = vld [vmem:[#allocation7 + $0x1e8] sm:$0xff]
        %v1818 = vld [vmem:[#allocation7 + $0x1f0] sm:$0xff]
        %v1819 = vld [vmem:[#allocation7 + $0x1f8] sm:$0xff]
        %v1884 = vunpack.c.l.b16 %v1756
        %v1885 = vunpack.c.h.b16 %v1756
        %v1886 = vunpack.c.l.b16 %v1757
        %v1887 = vunpack.c.h.b16 %v1757
        %v1888 = vunpack.c.l.b16 %v1758
        %v1889 = vunpack.c.h.b16 %v1758
        %v1890 = vunpack.c.l.b16 %v1759
        %v1891 = vunpack.c.h.b16 %v1759
        %v1892 = vunpack.c.l.b16 %v1760
        %v1893 = vunpack.c.h.b16 %v1760
        %v1894 = vunpack.c.l.b16 %v1761
        %v1895 = vunpack.c.h.b16 %v1761
        %v1896 = vunpack.c.l.b16 %v1762
        %v1897 = vunpack.c.h.b16 %v1762
        %v1898 = vunpack.c.l.b16 %v1763
        %v1899 = vunpack.c.h.b16 %v1763
        %v1900 = vunpack.c.l.b16 %v1764
        %v1901 = vunpack.c.h.b16 %v1764
        %v1902 = vunpack.c.l.b16 %v1765
        %v1903 = vunpack.c.h.b16 %v1765
        %v1904 = vunpack.c.l.b16 %v1766
        %v1905 = vunpack.c.h.b16 %v1766
        %v1906 = vunpack.c.l.b16 %v1767
        %v1907 = vunpack.c.h.b16 %v1767
        %v1908 = vunpack.c.l.b16 %v1768
        %v1909 = vunpack.c.h.b16 %v1768
        %v1910 = vunpack.c.l.b16 %v1769
        %v1911 = vunpack.c.h.b16 %v1769
        %v1912 = vunpack.c.l.b16 %v1770
        %v1913 = vunpack.c.h.b16 %v1770
        %v1914 = vunpack.c.l.b16 %v1771
        %v1915 = vunpack.c.h.b16 %v1771
        %v1916 = vunpack.c.l.b16 %v1772
        %v1917 = vunpack.c.h.b16 %v1772
        %v1918 = vunpack.c.l.b16 %v1773
        %v1919 = vunpack.c.h.b16 %v1773
        %v1920 = vunpack.c.l.b16 %v1774
        %v1921 = vunpack.c.h.b16 %v1774
        %v1922 = vunpack.c.l.b16 %v1775
        %v1923 = vunpack.c.h.b16 %v1775
        %v1924 = vunpack.c.l.b16 %v1776
        %v1925 = vunpack.c.h.b16 %v1776
        %v1926 = vunpack.c.l.b16 %v1777
        %v1927 = vunpack.c.h.b16 %v1777
        %v1928 = vunpack.c.l.b16 %v1778
        %v1929 = vunpack.c.h.b16 %v1778
        %v1930 = vunpack.c.l.b16 %v1779
        %v1931 = vunpack.c.h.b16 %v1779
        %v1932 = vunpack.c.l.b16 %v1780
        %v1933 = vunpack.c.h.b16 %v1780
        %v1934 = vunpack.c.l.b16 %v1781
        %v1935 = vunpack.c.h.b16 %v1781
        %v1936 = vunpack.c.l.b16 %v1782
        %v1937 = vunpack.c.h.b16 %v1782
        %v1938 = vunpack.c.l.b16 %v1783
        %v1939 = vunpack.c.h.b16 %v1783
        %v1940 = vunpack.c.l.b16 %v1784
        %v1941 = vunpack.c.h.b16 %v1784
        %v1942 = vunpack.c.l.b16 %v1785
        %v1943 = vunpack.c.h.b16 %v1785
        %v1944 = vunpack.c.l.b16 %v1786
        %v1945 = vunpack.c.h.b16 %v1786
        %v1946 = vunpack.c.l.b16 %v1787
        %v1947 = vunpack.c.h.b16 %v1787
        %v1948 = vunpack.c.l.b16 %v1788
        %v1949 = vunpack.c.h.b16 %v1788
        %v1950 = vunpack.c.l.b16 %v1789
        %v1951 = vunpack.c.h.b16 %v1789
        %v1952 = vunpack.c.l.b16 %v1790
        %v1953 = vunpack.c.h.b16 %v1790
        %v1954 = vunpack.c.l.b16 %v1791
        %v1955 = vunpack.c.h.b16 %v1791
        %v1956 = vunpack.c.l.b16 %v1792
        %v1957 = vunpack.c.h.b16 %v1792
        %v1958 = vunpack.c.l.b16 %v1793
        %v1959 = vunpack.c.h.b16 %v1793
        %v1960 = vunpack.c.l.b16 %v1794
        %v1961 = vunpack.c.h.b16 %v1794
        %v1962 = vunpack.c.l.b16 %v1795
        %v1963 = vunpack.c.h.b16 %v1795
        %v1964 = vunpack.c.l.b16 %v1796
        %v1965 = vunpack.c.h.b16 %v1796
        %v1966 = vunpack.c.l.b16 %v1797
        %v1967 = vunpack.c.h.b16 %v1797
        %v1968 = vunpack.c.l.b16 %v1798
        %v1969 = vunpack.c.h.b16 %v1798
        %v1970 = vunpack.c.l.b16 %v1799
        %v1971 = vunpack.c.h.b16 %v1799
        %v1972 = vunpack.c.l.b16 %v1800
        %v1973 = vunpack.c.h.b16 %v1800
        %v1974 = vunpack.c.l.b16 %v1801
        %v1975 = vunpack.c.h.b16 %v1801
        %v1976 = vunpack.c.l.b16 %v1802
        %v1977 = vunpack.c.h.b16 %v1802
        %v1978 = vunpack.c.l.b16 %v1803
        %v1979 = vunpack.c.h.b16 %v1803
        %v1980 = vunpack.c.l.b16 %v1804
        %v1981 = vunpack.c.h.b16 %v1804
        %v1982 = vunpack.c.l.b16 %v1805
        %v1983 = vunpack.c.h.b16 %v1805
        %v1984 = vunpack.c.l.b16 %v1806
        %v1985 = vunpack.c.h.b16 %v1806
        %v1986 = vunpack.c.l.b16 %v1807
        %v1987 = vunpack.c.h.b16 %v1807
        %v1988 = vunpack.c.l.b16 %v1808
        %v1989 = vunpack.c.h.b16 %v1808
        %v1990 = vunpack.c.l.b16 %v1809
        %v1991 = vunpack.c.h.b16 %v1809
        %v1992 = vunpack.c.l.b16 %v1810
        %v1993 = vunpack.c.h.b16 %v1810
        %v1994 = vunpack.c.l.b16 %v1811
        %v1995 = vunpack.c.h.b16 %v1811
        %v1996 = vunpack.c.l.b16 %v1812
        %v1997 = vunpack.c.h.b16 %v1812
        %v1998 = vunpack.c.l.b16 %v1813
        %v1999 = vunpack.c.h.b16 %v1813
        %v2000 = vunpack.c.l.b16 %v1814
        %v2001 = vunpack.c.h.b16 %v1814
        %v2002 = vunpack.c.l.b16 %v1815
        %v2003 = vunpack.c.h.b16 %v1815
        %v2004 = vunpack.c.l.b16 %v1816
        %v2005 = vunpack.c.h.b16 %v1816
        %v2006 = vunpack.c.l.b16 %v1817
        %v2007 = vunpack.c.h.b16 %v1817
        %v2008 = vunpack.c.l.b16 %v1818
        %v2009 = vunpack.c.h.b16 %v1818
        %v2010 = vunpack.c.l.b16 %v1819
        %v2011 = vunpack.c.h.b16 %v1819
        %v2012 = vpack.c.b16 %v1886, %v1884
        %v2013 = vpack.c.b16 %v1887, %v1885
        %v2014 = vpack.c.b16 %v1890, %v1888
        %v2015 = vpack.c.b16 %v1891, %v1889
        %v2016 = vpack.c.b16 %v1894, %v1892
        %v2017 = vpack.c.b16 %v1895, %v1893
        %v2018 = vpack.c.b16 %v1898, %v1896
        %v2019 = vpack.c.b16 %v1899, %v1897
        %v2020 = vpack.c.b16 %v1902, %v1900
        %v2021 = vpack.c.b16 %v1903, %v1901
        %v2022 = vpack.c.b16 %v1906, %v1904
        %v2023 = vpack.c.b16 %v1907, %v1905
        %v2024 = vpack.c.b16 %v1910, %v1908
        %v2025 = vpack.c.b16 %v1911, %v1909
        %v2026 = vpack.c.b16 %v1914, %v1912
        %v2027 = vpack.c.b16 %v1915, %v1913
        %v2028 = vpack.c.b16 %v1918, %v1916
        %v2029 = vpack.c.b16 %v1919, %v1917
        %v2030 = vpack.c.b16 %v1922, %v1920
        %v2031 = vpack.c.b16 %v1923, %v1921
        %v2032 = vpack.c.b16 %v1926, %v1924
        %v2033 = vpack.c.b16 %v1927, %v1925
        %v2034 = vpack.c.b16 %v1930, %v1928
        %v2035 = vpack.c.b16 %v1931, %v1929
        %v2036 = vpack.c.b16 %v1934, %v1932
        %v2037 = vpack.c.b16 %v1935, %v1933
        %v2038 = vpack.c.b16 %v1938, %v1936
        %v2039 = vpack.c.b16 %v1939, %v1937
        %v2040 = vpack.c.b16 %v1942, %v1940
        %v2041 = vpack.c.b16 %v1943, %v1941
        %v2042 = vpack.c.b16 %v1946, %v1944
        %v2043 = vpack.c.b16 %v1947, %v1945
        %v2044 = vpack.c.b16 %v1950, %v1948
        %v2045 = vpack.c.b16 %v1951, %v1949
        %v2046 = vpack.c.b16 %v1954, %v1952
        %v2047 = vpack.c.b16 %v1955, %v1953
        %v2048 = vpack.c.b16 %v1958, %v1956
        %v2049 = vpack.c.b16 %v1959, %v1957
        %v2050 = vpack.c.b16 %v1962, %v1960
        %v2051 = vpack.c.b16 %v1963, %v1961
        %v2052 = vpack.c.b16 %v1966, %v1964
        %v2053 = vpack.c.b16 %v1967, %v1965
        %v2054 = vpack.c.b16 %v1970, %v1968
        %v2055 = vpack.c.b16 %v1971, %v1969
        %v2056 = vpack.c.b16 %v1974, %v1972
        %v2057 = vpack.c.b16 %v1975, %v1973
        %v2058 = vpack.c.b16 %v1978, %v1976
        %v2059 = vpack.c.b16 %v1979, %v1977
        %v2060 = vpack.c.b16 %v1982, %v1980
        %v2061 = vpack.c.b16 %v1983, %v1981
        %v2062 = vpack.c.b16 %v1986, %v1984
        %v2063 = vpack.c.b16 %v1987, %v1985
        %v2064 = vpack.c.b16 %v1990, %v1988
        %v2065 = vpack.c.b16 %v1991, %v1989
        %v2066 = vpack.c.b16 %v1994, %v1992
        %v2067 = vpack.c.b16 %v1995, %v1993
        %v2068 = vpack.c.b16 %v1998, %v1996
        %v2069 = vpack.c.b16 %v1999, %v1997
        %v2070 = vpack.c.b16 %v2002, %v2000
        %v2071 = vpack.c.b16 %v2003, %v2001
        %v2072 = vpack.c.b16 %v2006, %v2004
        %v2073 = vpack.c.b16 %v2007, %v2005
        %v2074 = vpack.c.b16 %v2010, %v2008
        %v2075 = vpack.c.b16 %v2011, %v2009
        %2140 = vmatprep.subr.bf16.mxu0 %v2013
        %2141 = vmatpush1.bf16.msra.mxu0 %v2012
        %2142 = vmatprep.subr.bf16.mxu0 %v2015
        %2143 = vmatpush1.bf16.msra.mxu0 %v2014
        %2144 = vmatprep.subr.bf16.mxu0 %v2017
        %2145 = vmatpush1.bf16.msra.mxu0 %v2016
        %2146 = vmatprep.subr.bf16.mxu0 %v2019
        %2147 = vmatpush1.bf16.msra.mxu0 %v2018
        %2148 = vmatprep.subr.bf16.mxu0 %v2021
        %2149 = vmatpush1.bf16.msra.mxu0 %v2020
        %2150 = vmatprep.subr.bf16.mxu0 %v2023
        %2151 = vmatpush1.bf16.msra.mxu0 %v2022
        %2152 = vmatprep.subr.bf16.mxu0 %v2025
        %2153 = vmatpush1.bf16.msra.mxu0 %v2024
        %2154 = vmatprep.subr.bf16.mxu0 %v2027
        %2155 = vmatpush1.bf16.msra.mxu0 %v2026
        %2156 = vmatprep.subr.bf16.mxu0 %v2029
        %2157 = vmatpush1.bf16.msra.mxu0 %v2028
        %2158 = vmatprep.subr.bf16.mxu0 %v2031
        %2159 = vmatpush1.bf16.msra.mxu0 %v2030
        %2160 = vmatprep.subr.bf16.mxu0 %v2033
        %2161 = vmatpush1.bf16.msra.mxu0 %v2032
        %2162 = vmatprep.subr.bf16.mxu0 %v2035
        %2163 = vmatpush1.bf16.msra.mxu0 %v2034
        %2164 = vmatprep.subr.bf16.mxu0 %v2037
        %2165 = vmatpush1.bf16.msra.mxu0 %v2036
        %2166 = vmatprep.subr.bf16.mxu0 %v2039
        %2167 = vmatpush1.bf16.msra.mxu0 %v2038
        %2168 = vmatprep.subr.bf16.mxu0 %v2041
        %2169 = vmatpush1.bf16.msra.mxu0 %v2040
        %2170 = vmatprep.subr.bf16.mxu0 %v2043
        %2171 = vmatpush1.bf16.msra.mxu0 %v2042
        %2172 = vmatprep.mubr.bf16.mxu0 %v1725
        %2173 = vmatmul.mubr.bf16.gmra.mrb[0].mxu0 %v1724
        %v2174 = vpop.f32.mrb[0].mxu0
        %v2175 = vadd.f32 0.0, %v2174
        %v2176 = vpop.f32.mrb[0].mxu0
        %v2177 = vadd.f32 0.0, %v2176
        %v2178 = vpop.f32.mrb[0].mxu0
        %v2179 = vadd.f32 0.0, %v2178
        %v2180 = vpop.f32.mrb[0].mxu0
        %v2181 = vadd.f32 0.0, %v2180
        %2182 = vmatprep.mubr.bf16.mxu0 %v1729
        %2183 = vmatmul.mubr.bf16.gmra.mrb[0].mxu0 %v1728
        %v2184 = vpop.f32.mrb[0].mxu0
        %v2185 = vadd.f32 0.0, %v2184
        %v2186 = vpop.f32.mrb[0].mxu0
        %v2187 = vadd.f32 0.0, %v2186
        %v2188 = vpop.f32.mrb[0].mxu0
        %v2189 = vadd.f32 0.0, %v2188
        %v2190 = vpop.f32.mrb[0].mxu0
        %v2191 = vadd.f32 0.0, %v2190
        %2192 = vmatprep.mubr.bf16.mxu0 %v1733
        %2193 = vmatmul.mubr.bf16.gmra.mrb[0].mxu0 %v1732
        %v2194 = vpop.f32.mrb[0].mxu0
        %v2195 = vadd.f32 0.0, %v2194
        %v2196 = vpop.f32.mrb[0].mxu0
        %v2197 = vadd.f32 0.0, %v2196
        %v2198 = vpop.f32.mrb[0].mxu0
        %v2199 = vadd.f32 0.0, %v2198
        %v2200 = vpop.f32.mrb[0].mxu0
        %v2201 = vadd.f32 0.0, %v2200
        %2202 = vmatprep.mubr.bf16.mxu0 %v1737
        %2203 = vmatmul.mubr.bf16.gmra.mrb[0].mxu0 %v1736
        %v2204 = vpop.f32.mrb[0].mxu0
        %v2205 = vadd.f32 0.0, %v2204
        %v2206 = vpop.f32.mrb[0].mxu0
        %v2207 = vadd.f32 0.0, %v2206
        %v2208 = vpop.f32.mrb[0].mxu0
        %v2209 = vadd.f32 0.0, %v2208
        %v2210 = vpop.f32.mrb[0].mxu0
        %v2211 = vadd.f32 0.0, %v2210
        %2212 = vmatprep.mubr.bf16.mxu0 %v1741
        %2213 = vmatmul.mubr.bf16.gmra.mrb[0].mxu0 %v1740
        %v2214 = vpop.f32.mrb[0].mxu0
        %v2215 = vadd.f32 0.0, %v2214
        %v2216 = vpop.f32.mrb[0].mxu0
        %v2217 = vadd.f32 0.0, %v2216
        %v2218 = vpop.f32.mrb[0].mxu0
        %v2219 = vadd.f32 0.0, %v2218
        %v2220 = vpop.f32.mrb[0].mxu0
        %v2221 = vadd.f32 0.0, %v2220
        %2222 = vmatprep.mubr.bf16.mxu0 %v1745
        %2223 = vmatmul.mubr.bf16.gmra.mrb[0].mxu0 %v1744
        %v2224 = vpop.f32.mrb[0].mxu0
        %v2225 = vadd.f32 0.0, %v2224
        %v2226 = vpop.f32.mrb[0].mxu0
        %v2227 = vadd.f32 0.0, %v2226
        %v2228 = vpop.f32.mrb[0].mxu0
        %v2229 = vadd.f32 0.0, %v2228
        %v2230 = vpop.f32.mrb[0].mxu0
        %v2231 = vadd.f32 0.0, %v2230
        %2232 = vmatprep.mubr.bf16.mxu0 %v1749
        %2233 = vmatmul.mubr.bf16.gmra.mrb[0].mxu0 %v1748
        %v2234 = vpop.f32.mrb[0].mxu0
        %v2235 = vadd.f32 0.0, %v2234
        %v2236 = vpop.f32.mrb[0].mxu0
        %v2237 = vadd.f32 0.0, %v2236
        %v2238 = vpop.f32.mrb[0].mxu0
        %v2239 = vadd.f32 0.0, %v2238
        %v2240 = vpop.f32.mrb[0].mxu0
        %v2241 = vadd.f32 0.0, %v2240
        %2242 = vmatprep.mubr.bf16.mxu0 %v1753
        %2243 = vmatmul.mubr.bf16.gmra.mrb[0].mxu0 %v1752
        %v2244 = vpop.f32.mrb[0].mxu0
        %v2245 = vadd.f32 0.0, %v2244
        %v2246 = vpop.f32.mrb[0].mxu0
        %v2247 = vadd.f32 0.0, %v2246
        %v2248 = vpop.f32.mrb[0].mxu0
        %v2249 = vadd.f32 0.0, %v2248
        %v2250 = vpop.f32.mrb[0].mxu0
        %v2251 = vadd.f32 0.0, %v2250
        %2252 = vdwg.mxu0
        %2253 = vmatprep.subr.bf16.mxu0 %v2045
        %2254 = vmatpush1.bf16.msra.mxu0 %v2044
        %2255 = vmatprep.subr.bf16.mxu0 %v2047
        %2256 = vmatpush1.bf16.msra.mxu0 %v2046
        %2257 = vmatprep.subr.bf16.mxu0 %v2049
        %2258 = vmatpush1.bf16.msra.mxu0 %v2048
        %2259 = vmatprep.subr.bf16.mxu0 %v2051
        %2260 = vmatpush1.bf16.msra.mxu0 %v2050
        %2261 = vmatprep.subr.bf16.mxu0 %v2053
        %2262 = vmatpush1.bf16.msra.mxu0 %v2052
        %2263 = vmatprep.subr.bf16.mxu0 %v2055
        %2264 = vmatpush1.bf16.msra.mxu0 %v2054
        %2265 = vmatprep.subr.bf16.mxu0 %v2057
        %2266 = vmatpush1.bf16.msra.mxu0 %v2056
        %2267 = vmatprep.subr.bf16.mxu0 %v2059
        %2268 = vmatpush1.bf16.msra.mxu0 %v2058
        %2269 = vmatprep.subr.bf16.mxu0 %v2061
        %2270 = vmatpush1.bf16.msra.mxu0 %v2060
        %2271 = vmatprep.subr.bf16.mxu0 %v2063
        %2272 = vmatpush1.bf16.msra.mxu0 %v2062
        %2273 = vmatprep.subr.bf16.mxu0 %v2065
        %2274 = vmatpush1.bf16.msra.mxu0 %v2064
        %2275 = vmatprep.subr.bf16.mxu0 %v2067
        %2276 = vmatpush1.bf16.msra.mxu0 %v2066
        %2277 = vmatprep.subr.bf16.mxu0 %v2069
        %2278 = vmatpush1.bf16.msra.mxu0 %v2068
        %2279 = vmatprep.subr.bf16.mxu0 %v2071
        %2280 = vmatpush1.bf16.msra.mxu0 %v2070
        %2281 = vmatprep.subr.bf16.mxu0 %v2073
        %2282 = vmatpush1.bf16.msra.mxu0 %v2072
        %2283 = vmatprep.subr.bf16.mxu0 %v2075
        %2284 = vmatpush1.bf16.msra.mxu0 %v2074
        %2285 = vmatprep.mubr.bf16.mxu0 %v1727
        %2286 = vmatmul.mubr.bf16.gmra.mrb[0].mxu0 %v1726
        %v2287 = vpop.f32.mrb[0].mxu0
        %v2288 = vadd.f32 %v2175, %v2287
        %v2289 = vpop.f32.mrb[0].mxu0
        %v2290 = vadd.f32 %v2177, %v2289
        %v2291 = vpop.f32.mrb[0].mxu0
        %v2292 = vadd.f32 %v2179, %v2291
        %v2293 = vpop.f32.mrb[0].mxu0
        %v2294 = vadd.f32 %v2181, %v2293
        %2295 = vmatprep.mubr.bf16.mxu0 %v1731
        %2296 = vmatmul.mubr.bf16.gmra.mrb[0].mxu0 %v1730
        %v2297 = vpop.f32.mrb[0].mxu0
        %v2298 = vadd.f32 %v2185, %v2297
        %v2299 = vpop.f32.mrb[0].mxu0
        %v2300 = vadd.f32 %v2187, %v2299
        %v2301 = vpop.f32.mrb[0].mxu0
        %v2302 = vadd.f32 %v2189, %v2301
        %v2303 = vpop.f32.mrb[0].mxu0
        %v2304 = vadd.f32 %v2191, %v2303
        %2305 = vmatprep.mubr.bf16.mxu0 %v1735
        %2306 = vmatmul.mubr.bf16.gmra.mrb[0].mxu0 %v1734
        %v2307 = vpop.f32.mrb[0].mxu0
        %v2308 = vadd.f32 %v2195, %v2307
        %v2309 = vpop.f32.mrb[0].mxu0
        %v2310 = vadd.f32 %v2197, %v2309
        %v2311 = vpop.f32.mrb[0].mxu0
        %v2312 = vadd.f32 %v2199, %v2311
        %v2313 = vpop.f32.mrb[0].mxu0
        %v2314 = vadd.f32 %v2201, %v2313
        %2315 = vmatprep.mubr.bf16.mxu0 %v1739
        %2316 = vmatmul.mubr.bf16.gmra.mrb[0].mxu0 %v1738
        %v2317 = vpop.f32.mrb[0].mxu0
        %v2318 = vadd.f32 %v2205, %v2317
        %v2319 = vpop.f32.mrb[0].mxu0
        %v2320 = vadd.f32 %v2207, %v2319
        %v2321 = vpop.f32.mrb[0].mxu0
        %v2322 = vadd.f32 %v2209, %v2321
        %v2323 = vpop.f32.mrb[0].mxu0
        %v2324 = vadd.f32 %v2211, %v2323
        %2325 = vmatprep.mubr.bf16.mxu0 %v1743
        %2326 = vmatmul.mubr.bf16.gmra.mrb[0].mxu0 %v1742
        %v2327 = vpop.f32.mrb[0].mxu0
        %v2328 = vadd.f32 %v2215, %v2327
        %v2329 = vpop.f32.mrb[0].mxu0
        %v2330 = vadd.f32 %v2217, %v2329
        %v2331 = vpop.f32.mrb[0].mxu0
        %v2332 = vadd.f32 %v2219, %v2331
        %v2333 = vpop.f32.mrb[0].mxu0
        %v2334 = vadd.f32 %v2221, %v2333
        %2335 = vmatprep.mubr.bf16.mxu0 %v1747
        %2336 = vmatmul.mubr.bf16.gmra.mrb[0].mxu0 %v1746
        %v2337 = vpop.f32.mrb[0].mxu0
        %v2338 = vadd.f32 %v2225, %v2337
        %v2339 = vpop.f32.mrb[0].mxu0
        %v2340 = vadd.f32 %v2227, %v2339
        %v2341 = vpop.f32.mrb[0].mxu0
        %v2342 = vadd.f32 %v2229, %v2341
        %v2343 = vpop.f32.mrb[0].mxu0
        %v2344 = vadd.f32 %v2231, %v2343
        %2345 = vmatprep.mubr.bf16.mxu0 %v1751
        %2346 = vmatmul.mubr.bf16.gmra.mrb[0].mxu0 %v1750
        %v2347 = vpop.f32.mrb[0].mxu0
        %v2348 = vadd.f32 %v2235, %v2347
        %v2349 = vpop.f32.mrb[0].mxu0
        %v2350 = vadd.f32 %v2237, %v2349
        %v2351 = vpop.f32.mrb[0].mxu0
        %v2352 = vadd.f32 %v2239, %v2351
        %v2353 = vpop.f32.mrb[0].mxu0
        %v2354 = vadd.f32 %v2241, %v2353
        %2355 = vmatprep.mubr.bf16.mxu0 %v1755
        %2356 = vmatmul.mubr.bf16.gmra.mrb[0].mxu0 %v1754
        %v2357 = vpop.f32.mrb[0].mxu0
        %v2358 = vadd.f32 %v2245, %v2357
        %v2359 = vpop.f32.mrb[0].mxu0
        %v2360 = vadd.f32 %v2247, %v2359
        %v2361 = vpop.f32.mrb[0].mxu0
        %v2362 = vadd.f32 %v2249, %v2361
        %v2363 = vpop.f32.mrb[0].mxu0
        %v2364 = vadd.f32 %v2251, %v2363
        %2365 = vdwg.mxu0
        %2366 = vst [vmem:[%s275] sm:$0xff] %v2288
        %2367 = vst [vmem:[%s275 + $0x8] sm:$0xff] %v2290
        %2368 = vst [vmem:[%s275 + $0x10] sm:$0xff] %v2292
        %2369 = vst [vmem:[%s275 + $0x18] sm:$0xff] %v2294
        %2370 = vst [vmem:[%s275 + $0x20] sm:$0xff] %v2298
        %2371 = vst [vmem:[%s275 + $0x28] sm:$0xff] %v2300
        %2372 = vst [vmem:[%s275 + $0x30] sm:$0xff] %v2302
        %2373 = vst [vmem:[%s275 + $0x38] sm:$0xff] %v2304
        %2374 = vst [vmem:[%s275 + $0x40] sm:$0xff] %v2308
        %2375 = vst [vmem:[%s275 + $0x48] sm:$0xff] %v2310
        %2376 = vst [vmem:[%s275 + $0x50] sm:$0xff] %v2312
        %2377 = vst [vmem:[%s275 + $0x58] sm:$0xff] %v2314
        %2378 = vst [vmem:[%s275 + $0x60] sm:$0xff] %v2318
        %2379 = vst [vmem:[%s275 + $0x68] sm:$0xff] %v2320
        %2380 = vst [vmem:[%s275 + $0x70] sm:$0xff] %v2322
        %2381 = vst [vmem:[%s275 + $0x78] sm:$0xff] %v2324
        %2382 = vst [vmem:[%s275 + $0x80] sm:$0xff] %v2328
        %2383 = vst [vmem:[%s275 + $0x88] sm:$0xff] %v2330
        %2384 = vst [vmem:[%s275 + $0x90] sm:$0xff] %v2332
        %2385 = vst [vmem:[%s275 + $0x98] sm:$0xff] %v2334
        %2386 = vst [vmem:[%s275 + $0xa0] sm:$0xff] %v2338
        %2387 = vst [vmem:[%s275 + $0xa8] sm:$0xff] %v2340
        %2388 = vst [vmem:[%s275 + $0xb0] sm:$0xff] %v2342
        %2389 = vst [vmem:[%s275 + $0xb8] sm:$0xff] %v2344
        %2390 = vst [vmem:[%s275 + $0xc0] sm:$0xff] %v2348
        %2391 = vst [vmem:[%s275 + $0xc8] sm:$0xff] %v2350
        %2392 = vst [vmem:[%s275 + $0xd0] sm:$0xff] %v2352
        %2393 = vst [vmem:[%s275 + $0xd8] sm:$0xff] %v2354
        %2394 = vst [vmem:[%s275 + $0xe0] sm:$0xff] %v2358
        %2395 = vst [vmem:[%s275 + $0xe8] sm:$0xff] %v2360
        %2396 = vst [vmem:[%s275 + $0xf0] sm:$0xff] %v2362
        %2397 = vst [vmem:[%s275 + $0xf8] sm:$0xff] %v2364
        %s2398 = smul.u32 16, %s18
        %p2399 = scmp.lt.s32.totalorder %s2398, 63
        %s2400 = scalar_select %p2399, %s2398, 63
        %s2401 = smul.addr %s2400, 2
        %s2402 = smul.addr %s2401, 8
        %s2403 = scalar_lea.vmem %s5, %s2402
        // Predicated region
        $region53: #{separator_forward.1} parent=39 // pred_check
          %p2404 = pneg %p146
        $region54: #{separator_forward.1} parent=39 // pred_check_branch
          %2406 = sbr.rel (%p2404) target = $region56
        $region55: #{separator_forward.1} parent=39 // pred_region
          %s2407 = smul.u32 16, %s18
        $region56: #{separator_forward.1} parent=39 // pred_fallthru
          _
      $region40: #{separator_forward.1} parent=5 // pred_fallthru
        _
      %p2408 = scmp.le.s32.totalorder 2, %s13
      // Predicated region
      $region57: #{separator_forward.1} parent=5 // pred_check
        %p2409 = pneg %p2408
      $region58: #{separator_forward.1} parent=5 // pred_check_branch
        %2411 = sbr.rel (%p2409) target = $region60
      $region59: #{separator_forward.1} parent=5 // pred_region
        %s2412 = ssub.s32 %s13, 2
        // Predicated region
        $region61: #{separator_forward.1} parent=59 // pred_check
          %p2413 = pneg %p152
        $region62: #{separator_forward.1} parent=59 // pred_check_branch
          %2415 = sbr.rel (%p2413) target = $region64
        $region63: #{separator_forward.1} parent=59 // pred_region
          %s2416 = smul.u32 16, %s19
          %p2417 = scmp.lt.s32.totalorder %s2416, 63
          %s2418 = scalar_select %p2417, %s2416, 63
          %s2419 = smul.addr %s2418, 2
          %s2420 = smul.addr %s2419, 8
          %s2421 = scalar_lea.vmem %s5, %s2420
        $region64: #{separator_forward.1} parent=59 // pred_fallthru
          _
      $region60: #{separator_forward.1} parent=5 // pred_fallthru
        _
    $region6: #{separator_forward.1} parent=1 // loop_footer
      %s17 = sadd.s32 1, %s13
    $region7: #{separator_forward.1} parent=1 // loop_footer_branch
      %12 = sbr.rel target = $region3
    $region8: #{separator_forward.1} parent=1 // loop_exit
      _
    %2422 = vsyncpa [#allocation4], 1
    %s2423 = scalar_lea.sflag [#allocation4], 1
    %2424 = vsyncpa %s2423, 1
    %2425 = vsyncpa [#allocation6], 1

</llo_original>
